<compile_context>
chip_gen: v7x
topology: tpu7x:2x2x1
jax: 0.10.0
libtpu: 0.0.40
codegen_flags: <defaults>
</compile_context>

<pallas_src>
import jax
import jax.numpy as jnp
from jax.experimental import pallas as pl
from jax.experimental.pallas import tpu as pltpu


def _cdiv(a, b):
    return (a + b - 1) // b


def _round_up(a, b):
    return _cdiv(a, b) * b


def _eh_output_kernel(fb_ref, nb_ref,                       # scalar-prefetch (SMEM)
                      idx_ref, x_ref, rbf_ref,
                      w_rbf_ref, w_up_ref, b_up_ref, w_w_ref, b_w_ref,
                      w_lins_ref, b_lins_ref, w_out_ref,
                      out_ref, acc_ref):
    n = pl.program_id(0)                      # node-tile index (parallel)
    e = pl.program_id(1)                      # edge-block step within this node tile
    tn = out_ref.shape[0]                     # node tile
    te = x_ref.shape[0]                       # edge tile
    num_layers = w_lins_ref.shape[0]

    @pl.when(e == 0)
    def _init():
        acc_ref[...] = jnp.zeros_like(acc_ref)

    # Only edge blocks that actually contain edges for this node tile do work.
    @pl.when(e < nb_ref[n])
    def _accum():
        # edge hot path: xe = lin_rbf(rbf) * x   (bf16, f32 MXU accumulate)
        xe = (jnp.dot(rbf_ref[...], w_rbf_ref[...],
                      preferred_element_type=jnp.float32).astype(jnp.bfloat16)
              * x_ref[...])                                            # [TE, H] bf16
        # blocked segment-sum via one-hot [TN, TE] MXU matmul
        node_ids = jax.lax.broadcasted_iota(jnp.int32, (tn, te), 0) + n * tn
        onehot = (node_ids == idx_ref[...]).astype(jnp.bfloat16)       # [TN, TE]
        acc_ref[...] += jnp.dot(onehot, xe,
                                preferred_element_type=jnp.float32)    # [TN, H] f32

    # node-side MLP once per node tile, after the last edge step
    @pl.when(e == pl.num_programs(1) - 1)
    def _finalize():
        xn = acc_ref[...]                                              # [TN, H] f32
        # energy-head projection (kept in f32 for accuracy; separate tiny dot)
        alpha = (jnp.dot(xn, w_w_ref[...],
                         preferred_element_type=jnp.float32)
                 + b_w_ref[...])                                       # [TN, 1]
        # lin_up in f32 (segment sum not rounded to bf16)
        h = (jnp.dot(xn, w_up_ref[...],
                     preferred_element_type=jnp.float32)
             + b_up_ref[...])                                          # [TN, O]
        for l in range(num_layers):
            h = (jnp.dot(h.astype(jnp.bfloat16), w_lins_ref[l],
                         preferred_element_type=jnp.float32)
                 + b_lins_ref[l])
            h = h * jax.nn.sigmoid(h)                                  # swish, f32
        # final projection, lane-dense (w_out zero-padded to 128 lanes)
        y = jnp.dot(h.astype(jnp.bfloat16), w_out_ref[...],
                    preferred_element_type=jnp.float32)                # [TN, 128]
        out_ref[...] = y * alpha


def eh_output_pp_block(x, rbf, i, params, *, num_nodes,
                       edge_tile=1024, node_tile=256):
    """Pallas wrapper. Returns the node-level output [num_nodes, out_channels]."""
    E, H = x.shape
    R = rbf.shape[1]
    O = params["w_up"].shape[1]
    C = params["w_out"].shape[1]
    L = params["w_lins"].shape[0]

    # ---- tile sizing: large tiles, but keep >=2 node tiles when possible (v7x)
    half_nodes = _round_up(max(1, _cdiv(num_nodes, 2)), 8)
    node_tile = max(8, min(node_tile, half_nodes))
    edge_tile = max(128, min(edge_tile, _round_up(E, 128)))
    assert edge_tile % 128 == 0 and node_tile % 8 == 0

    out_lanes = max(128, _round_up(C, 128))              # lane-dense output width
    e_pad = _round_up(E, edge_tile)
    n_pad = _round_up(num_nodes, node_tile)
    num_node_tiles = n_pad // node_tile
    num_edge_blocks = e_pad // edge_tile

    # ---- sort edges by destination node -> contiguous per-node-tile edge ranges
    order = jnp.argsort(i.astype(jnp.int32))
    idx_s = i.astype(jnp.int32)[order]
    x_s = x.astype(jnp.bfloat16)[order]
    rbf_s = rbf.astype(jnp.bfloat16)[order]

    # padded edges: idx = n_pad (matches no node row), x/rbf = 0
    x_p = jnp.pad(x_s, ((0, e_pad - E), (0, 0)))
    rbf_p = jnp.pad(rbf_s, ((0, e_pad - E), (0, 0)))
    idx_p = jnp.pad(idx_s, (0, e_pad - E),
                    constant_values=n_pad).reshape(1, e_pad)

    # per-node-tile edge-block ranges (scalar-prefetch arrays, SMEM)
    tile_of_edge = idx_s // node_tile                      # sorted, non-decreasing
    tiles = jnp.arange(num_node_tiles, dtype=jnp.int32)
    starts = jnp.searchsorted(tile_of_edge, tiles, side="left").astype(jnp.int32)
    ends = jnp.searchsorted(tile_of_edge, tiles, side="right").astype(jnp.int32)
    has = ends > starts
    first_block = jnp.minimum(jnp.where(has, starts // edge_tile, 0),
                              num_edge_blocks - 1).astype(jnp.int32)
    last_block = jnp.where(has, (ends - 1) // edge_tile, first_block)
    nblocks = jnp.where(has, last_block - first_block + 1, 0).astype(jnp.int32)

    # ---- parameter prep
    w_rbf = params["w_rbf"].astype(jnp.bfloat16)                       # [R, H]
    w_up = params["w_up"].astype(jnp.float32)                          # [H, O]
    b_up = params["b_up"].astype(jnp.float32)                          # [1, O]
    w_w = params["w_w"].astype(jnp.float32)                            # [H, 1]
    b_w = params["b_w"].astype(jnp.float32)                            # [1, 1]
    w_lins = params["w_lins"].astype(jnp.bfloat16)                     # [L, O, O]
    b_lins = params["b_lins"].astype(jnp.float32)                      # [L, 1, O]
    w_out_pad = jnp.pad(params["w_out"],
                        ((0, 0), (0, out_lanes - C))).astype(jnp.bfloat16)

    # clamped data-dependent edge-block index (repeats -> no re-DMA on skipped steps)
    def _blk(n, e, fb, nb):
        return fb[n] + jnp.minimum(e, jnp.maximum(nb[n] - 1, 0))

    grid = (num_node_tiles, num_edge_blocks)

    out = pl.pallas_call(
        _eh_output_kernel,
        out_shape=jax.ShapeDtypeStruct((n_pad, out_lanes), jnp.float32),
        grid_spec=pltpu.PrefetchScalarGridSpec(
            num_scalar_prefetch=2,
            grid=grid,
            in_specs=[
                pl.BlockSpec((1, edge_tile),
                             lambda n, e, fb, nb: (0, _blk(n, e, fb, nb))),   # idx
                pl.BlockSpec((edge_tile, H),
                             lambda n, e, fb, nb: (_blk(n, e, fb, nb), 0)),   # x
                pl.BlockSpec((edge_tile, R),
                             lambda n, e, fb, nb: (_blk(n, e, fb, nb), 0)),   # rbf
                pl.BlockSpec((R, H), lambda n, e, fb, nb: (0, 0)),            # w_rbf
                pl.BlockSpec((H, O), lambda n, e, fb, nb: (0, 0)),            # w_up
                pl.BlockSpec((1, O), lambda n, e, fb, nb: (0, 0)),            # b_up
                pl.BlockSpec((H, 1), lambda n, e, fb, nb: (0, 0)),            # w_w
                pl.BlockSpec((1, 1), lambda n, e, fb, nb: (0, 0)),            # b_w
                pl.BlockSpec((L, O, O), lambda n, e, fb, nb: (0, 0, 0)),      # hidden W
                pl.BlockSpec((L, 1, O), lambda n, e, fb, nb: (0, 0, 0)),      # hidden b
                pl.BlockSpec((O, out_lanes), lambda n, e, fb, nb: (0, 0)),    # lin
            ],
            out_specs=pl.BlockSpec((node_tile, out_lanes),
                                   lambda n, e, fb, nb: (n, 0)),
            scratch_shapes=[pltpu.VMEM((node_tile, H), jnp.float32)],         # segsum acc
        ),
        compiler_params=pltpu.CompilerParams(
            dimension_semantics=("parallel", "arbitrary"),
            vmem_limit_bytes=32 * 1024 * 1024,       # safe on v7x's 64 MiB VMEM
        ),
    )(first_block, nblocks, idx_p, x_p, rbf_p,
      w_rbf, w_up, b_up, w_w, b_w, w_lins, b_lins, w_out_pad)

    return out[:num_nodes, :C]


def _reference(x, rbf, i, params, *, num_nodes, num_layers):
    """Pure-JAX f32 reference for correctness checking."""
    xe = (rbf @ params["w_rbf"]) * x
    xn = jax.ops.segment_sum(xe, i, num_segments=num_nodes)
    alpha = xn @ params["w_w"] + params["b_w"]
    h = xn @ params["w_up"] + params["b_up"]
    for l in range(num_layers):
        h = h @ params["w_lins"][l] + params["b_lins"][l]
        h = h * jax.nn.sigmoid(h)
    y = h @ params["w_out"]
    return y * alpha


if __name__ == "__main__":
    # Small shapes consistent with the module's forward pass.
    num_radial = 8
    hidden_channels = 32
    out_emb_channels = 32
    out_channels = 4
    num_layers = 2
    E = 256         # number of edges / messages
    N = 16          # num_nodes (wrapper picks node_tile=8 -> 2 node tiles)

    key = jax.random.PRNGKey(0)
    ks = jax.random.split(key, 12)

    # Deterministic synthetic parameters (nn.Linear weights, transposed).
    # NOTE: the torch module fills self.lin.weight with 0 in reset_parameters();
    # we use a nonzero deterministic init so the output is non-trivial.
    params = {
        "w_rbf":  0.1 * jax.random.normal(ks[0], (num_radial, hidden_channels), jnp.float32),
        "w_up":   0.1 * jax.random.normal(ks[1], (hidden_channels, out_emb_channels), jnp.float32),
        "b_up":   0.1 * jax.random.normal(ks[2], (1, out_emb_channels), jnp.float32),
        "w_lins": 0.1 * jax.random.normal(ks[3], (num_layers, out_emb_channels, out_emb_channels), jnp.float32),
        "b_lins": jnp.zeros((num_layers, 1, out_emb_channels), jnp.float32),
        "w_out":  0.1 * jax.random.normal(ks[4], (out_emb_channels, out_channels), jnp.float32),
        "w_w":    0.1 * jax.random.normal(ks[5], (hidden_channels, 1), jnp.float32),
        "b_w":    jnp.zeros((1, 1), jnp.float32),
    }

    x = jax.random.normal(ks[6], (E, hidden_channels), jnp.float32)
    rbf = jax.random.normal(ks[7], (E, num_radial), jnp.float32)
    i_idx = jax.random.randint(ks[8], (E,), 0, N, dtype=jnp.int32)
    batch = jnp.zeros((N,), jnp.int32)      # passthrough, returned unchanged

    out = eh_output_pp_block(x, rbf, i_idx, params, num_nodes=N)
    out = jax.block_until_ready(out)

    ref = _reference(x, rbf, i_idx, params, num_nodes=N, num_layers=num_layers)
    assert out.shape == (N, out_channels)
    max_err = float(jnp.max(jnp.abs(out - ref)))
    # bf16 MXU matmuls (f32 accumulation, f32 segment sum kept through lin_up).
    assert jnp.allclose(out, ref, atol=2e-2, rtol=2e-2), \
        f"mismatch vs reference (max abs err {max_err})"

    result = (out, batch)   # module returns (x, batch)
    print("KERNEL_OK")
</pallas_src>

<mosaic_0001>
module attributes {stable_mosaic.version = 11 : i64} {
  func.func @_eh_output_kernel(%arg0: i32, %arg1: i32, %arg2: memref<2xi32, #tpu.memory_space<smem>>, %arg3: memref<2xi32, #tpu.memory_space<smem>>, %arg4: memref<1x256xi32, #tpu.memory_space<vmem>>, %arg5: memref<256x32xbf16, #tpu.memory_space<vmem>>, %arg6: memref<256x8xbf16, #tpu.memory_space<vmem>>, %arg7: memref<8x32xbf16, #tpu.memory_space<vmem>>, %arg8: memref<32x32xf32, #tpu.memory_space<vmem>>, %arg9: memref<1x32xf32, #tpu.memory_space<vmem>>, %arg10: memref<32x1xf32, #tpu.memory_space<vmem>>, %arg11: memref<1x1xf32, #tpu.memory_space<vmem>>, %arg12: memref<2x32x32xbf16, #tpu.memory_space<vmem>>, %arg13: memref<2x1x32xf32, #tpu.memory_space<vmem>>, %arg14: memref<32x128xbf16, #tpu.memory_space<vmem>>, %arg15: memref<8x128xf32, #tpu.memory_space<vmem>>, %arg16: memref<8x32xf32, #tpu.memory_space<vmem>>) attributes {dimension_semantics = [#tpu.dimension_semantics<parallel>, #tpu.dimension_semantics<arbitrary>], iteration_bounds = array<i64: 2, 1>, scalar_prefetch = 2 : i64, scratch_operands = 1 : i64, tpu.core_type = #tpu.core_type<tc>, window_params = [{transform_indices = @transform_0, window_bounds = array<i64: 1, 256>}, {transform_indices = @transform_1, window_bounds = array<i64: 256, 32>}, {transform_indices = @transform_2, window_bounds = array<i64: 256, 8>}, {pipeline_mode = #tpu.pipeline_mode<synchronous>, transform_indices = @transform_3, window_bounds = array<i64: 8, 32>}, {pipeline_mode = #tpu.pipeline_mode<synchronous>, transform_indices = @transform_4, window_bounds = array<i64: 32, 32>}, {pipeline_mode = #tpu.pipeline_mode<synchronous>, transform_indices = @transform_5, window_bounds = array<i64: 1, 32>}, {pipeline_mode = #tpu.pipeline_mode<synchronous>, transform_indices = @transform_6, window_bounds = array<i64: 32, 1>}, {pipeline_mode = #tpu.pipeline_mode<synchronous>, transform_indices = @transform_7, window_bounds = array<i64: 1, 1>}, {pipeline_mode = #tpu.pipeline_mode<synchronous>, transform_indices = @transform_8, window_bounds = array<i64: 2, 32, 32>}, {pipeline_mode = #tpu.pipeline_mode<synchronous>, transform_indices = @transform_9, window_bounds = array<i64: 2, 1, 32>}, {pipeline_mode = #tpu.pipeline_mode<synchronous>, transform_indices = @transform_10, window_bounds = array<i64: 32, 128>}, {transform_indices = @transform_11, window_bounds = array<i64: 8, 128>}]} {
    %c0_i32 = arith.constant 0 : i32
    %0 = arith.cmpi eq, %arg1, %c0_i32 : i32
    %1 = arith.extui %0 : i1 to i32
    %c0_i32_0 = arith.constant 0 : i32
    %2 = arith.cmpi ne, %1, %c0_i32_0 : i32
    scf.if %2 {
      %cst = arith.constant 0.000000e+00 : f32
      %11 = vector.broadcast %cst : f32 to vector<8x32xf32>
      %c0 = arith.constant 0 : index
      %c0_4 = arith.constant 0 : index
      %12 = vector.load %arg16[%c0, %c0_4] : memref<8x32xf32, #tpu.memory_space<vmem>>, vector<8x32xf32>
      tpu.vector_store %arg16[%c0, %c0_4], %11 {strides = array<i32>} : memref<8x32xf32, #tpu.memory_space<vmem>>, vector<8x32xf32>,
    } else {
    }
    %3 = arith.index_cast %arg0 : i32 to index
    %4 = memref.load %arg3[%3] : memref<2xi32, #tpu.memory_space<smem>>
    %5 = arith.cmpi slt, %arg1, %4 : i32
    %6 = arith.extui %5 : i1 to i32
    %c0_i32_1 = arith.constant 0 : i32
    %7 = arith.cmpi ne, %6, %c0_i32_1 : i32
    scf.if %7 {
      %c0 = arith.constant 0 : index
      %c0_4 = arith.constant 0 : index
      %11 = vector.load %arg6[%c0, %c0_4] : memref<256x8xbf16, #tpu.memory_space<vmem>>, vector<256x8xbf16>
      %c0_5 = arith.constant 0 : index
      %c0_6 = arith.constant 0 : index
      %12 = vector.load %arg7[%c0_5, %c0_6] : memref<8x32xbf16, #tpu.memory_space<vmem>>, vector<8x32xbf16>
      %cst = arith.constant dense<0.000000e+00> : vector<256x32xf32>
      %13 = tpu.matmul %11, %12, %cst {dimension_numbers = #tpu.dot_dimension_numbers<[1], [0], [0], [1], [0, 0, 1, 1], [], []>} : vector<256x8xbf16>, vector<8x32xbf16>, vector<256x32xf32> -> vector<256x32xf32>
      %14 = arith.truncf %13 : vector<256x32xf32> to vector<256x32xbf16>
      %c0_7 = arith.constant 0 : index
      %c0_8 = arith.constant 0 : index
      %15 = vector.load %arg5[%c0_7, %c0_8] : memref<256x32xbf16, #tpu.memory_space<vmem>>, vector<256x32xbf16>
      %16 = arith.mulf %14, %15 : vector<256x32xbf16>
      %17 = tpu.iota {dimensions = array<i32: 0>} : vector<8x256xi32>
      %c8_i32 = arith.constant 8 : i32
      %18 = arith.muli %arg0, %c8_i32 : i32
      %19 = vector.broadcast %18 : i32 to vector<8x256xi32>
      %20 = arith.addi %17, %19 : vector<8x256xi32>
      %c0_9 = arith.constant 0 : index
      %c0_10 = arith.constant 0 : index
      %21 = vector.load %arg4[%c0_9, %c0_10] : memref<1x256xi32, #tpu.memory_space<vmem>>, vector<1x256xi32>
      %22 = vector.broadcast %21 : vector<1x256xi32> to vector<8x256xi32>
      %23 = arith.cmpi eq, %20, %22 : vector<8x256xi32>
      %24 = arith.extui %23 : vector<8x256xi1> to vector<8x256xi32>
      %25 = arith.sitofp %24 : vector<8x256xi32> to vector<8x256xf32>
      %26 = arith.truncf %25 : vector<8x256xf32> to vector<8x256xbf16>
      %c0_11 = arith.constant 0 : index
      %c0_12 = arith.constant 0 : index
      %27 = vector.load %arg16[%c0_11, %c0_12] : memref<8x32xf32, #tpu.memory_space<vmem>>, vector<8x32xf32>
      %cst_13 = arith.constant dense<0.000000e+00> : vector<8x32xf32>
      %28 = tpu.matmul %26, %16, %cst_13 {dimension_numbers = #tpu.dot_dimension_numbers<[1], [0], [0], [1], [0, 0, 1, 1], [], []>} : vector<8x256xbf16>, vector<256x32xbf16>, vector<8x32xf32> -> vector<8x32xf32>
      %29 = arith.addf %27, %28 : vector<8x32xf32>
      %c0_14 = arith.constant 0 : index
      %c0_15 = arith.constant 0 : index
      %30 = vector.load %arg16[%c0_14, %c0_15] : memref<8x32xf32, #tpu.memory_space<vmem>>, vector<8x32xf32>
      tpu.vector_store %arg16[%c0_14, %c0_15], %29 {strides = array<i32>} : memref<8x32xf32, #tpu.memory_space<vmem>>, vector<8x32xf32>,
    } else {
    }
    %c0_i32_2 = arith.constant 0 : i32
    %8 = arith.cmpi eq, %arg1, %c0_i32_2 : i32
    %9 = arith.extui %8 : i1 to i32
    %c0_i32_3 = arith.constant 0 : i32
    %10 = arith.cmpi ne, %9, %c0_i32_3 : i32
    scf.if %10 {
      %c0 = arith.constant 0 : index
      %c0_4 = arith.constant 0 : index
      %11 = vector.load %arg16[%c0, %c0_4] : memref<8x32xf32, #tpu.memory_space<vmem>>, vector<8x32xf32>
      %c0_5 = arith.constant 0 : index
      %c0_6 = arith.constant 0 : index
      %12 = vector.load %arg10[%c0_5, %c0_6] : memref<32x1xf32, #tpu.memory_space<vmem>>, vector<32x1xf32>
      %cst = arith.constant dense<0.000000e+00> : vector<8x1xf32>
      %13 = tpu.matmul %11, %12, %cst {dimension_numbers = #tpu.dot_dimension_numbers<[1], [0], [0], [1], [0, 0, 1, 1], [], []>} : vector<8x32xf32>, vector<32x1xf32>, vector<8x1xf32> -> vector<8x1xf32>
      %c0_7 = arith.constant 0 : index
      %c0_8 = arith.constant 0 : index
      %14 = vector.load %arg11[%c0_7, %c0_8] : memref<1x1xf32, #tpu.memory_space<vmem>>, vector<1x1xf32>
      %15 = vector.broadcast %14 : vector<1x1xf32> to vector<8x1xf32>
      %16 = arith.addf %13, %15 : vector<8x1xf32>
      %c0_9 = arith.constant 0 : index
      %c0_10 = arith.constant 0 : index
      %17 = vector.load %arg8[%c0_9, %c0_10] : memref<32x32xf32, #tpu.memory_space<vmem>>, vector<32x32xf32>
      %cst_11 = arith.constant dense<0.000000e+00> : vector<8x32xf32>
      %18 = tpu.matmul %11, %17, %cst_11 {dimension_numbers = #tpu.dot_dimension_numbers<[1], [0], [0], [1], [0, 0, 1, 1], [], []>} : vector<8x32xf32>, vector<32x32xf32>, vector<8x32xf32> -> vector<8x32xf32>
      %c0_12 = arith.constant 0 : index
      %c0_13 = arith.constant 0 : index
      %19 = vector.load %arg9[%c0_12, %c0_13] : memref<1x32xf32, #tpu.memory_space<vmem>>, vector<1x32xf32>
      %20 = vector.broadcast %19 : vector<1x32xf32> to vector<8x32xf32>
      %21 = arith.addf %18, %20 : vector<8x32xf32>
      %22 = arith.truncf %21 : vector<8x32xf32> to vector<8x32xbf16>
      %c0_14 = arith.constant 0 : index
      %c0_15 = arith.constant 0 : index
      %c0_16 = arith.constant 0 : index
      %23 = vector.load %arg12[%c0_14, %c0_15, %c0_16] : memref<2x32x32xbf16, #tpu.memory_space<vmem>>, vector<1x32x32xbf16>
      %24 = vector.shape_cast %23 : vector<1x32x32xbf16> to vector<32x32xbf16>
      %cst_17 = arith.constant dense<0.000000e+00> : vector<8x32xf32>
      %25 = tpu.matmul %22, %24, %cst_17 {dimension_numbers = #tpu.dot_dimension_numbers<[1], [0], [0], [1], [0, 0, 1, 1], [], []>} : vector<8x32xbf16>, vector<32x32xbf16>, vector<8x32xf32> -> vector<8x32xf32>
      %c0_18 = arith.constant 0 : index
      %c0_19 = arith.constant 0 : index
      %c0_20 = arith.constant 0 : index
      %26 = vector.load %arg13[%c0_18, %c0_19, %c0_20] : memref<2x1x32xf32, #tpu.memory_space<vmem>>, vector<1x1x32xf32>
      %27 = vector.shape_cast %26 : vector<1x1x32xf32> to vector<1x32xf32>
      %28 = vector.broadcast %27 : vector<1x32xf32> to vector<8x32xf32>
      %29 = arith.addf %25, %28 : vector<8x32xf32>
      %30 = arith.negf %29 : vector<8x32xf32>
      %31 = math.exp %30 : vector<8x32xf32>
      %cst_21 = arith.constant 1.000000e+00 : f32
      %32 = vector.broadcast %cst_21 : f32 to vector<8x32xf32>
      %33 = arith.addf %32, %31 : vector<8x32xf32>
      %34 = arith.divf %32, %33 : vector<8x32xf32>
      %35 = arith.mulf %29, %34 : vector<8x32xf32>
      %36 = arith.truncf %35 : vector<8x32xf32> to vector<8x32xbf16>
      %c1 = arith.constant 1 : index
      %c0_22 = arith.constant 0 : index
      %c0_23 = arith.constant 0 : index
      %37 = vector.load %arg12[%c1, %c0_22, %c0_23] : memref<2x32x32xbf16, #tpu.memory_space<vmem>>, vector<1x32x32xbf16>
      %38 = vector.shape_cast %37 : vector<1x32x32xbf16> to vector<32x32xbf16>
      %cst_24 = arith.constant dense<0.000000e+00> : vector<8x32xf32>
      %39 = tpu.matmul %36, %38, %cst_24 {dimension_numbers = #tpu.dot_dimension_numbers<[1], [0], [0], [1], [0, 0, 1, 1], [], []>} : vector<8x32xbf16>, vector<32x32xbf16>, vector<8x32xf32> -> vector<8x32xf32>
      %c1_25 = arith.constant 1 : index
      %c0_26 = arith.constant 0 : index
      %c0_27 = arith.constant 0 : index
      %40 = vector.load %arg13[%c1_25, %c0_26, %c0_27] : memref<2x1x32xf32, #tpu.memory_space<vmem>>, vector<1x1x32xf32>
      %41 = vector.shape_cast %40 : vector<1x1x32xf32> to vector<1x32xf32>
      %42 = vector.broadcast %41 : vector<1x32xf32> to vector<8x32xf32>
      %43 = arith.addf %39, %42 : vector<8x32xf32>
      %44 = arith.negf %43 : vector<8x32xf32>
      %45 = math.exp %44 : vector<8x32xf32>
      %cst_28 = arith.constant 1.000000e+00 : f32
      %46 = vector.broadcast %cst_28 : f32 to vector<8x32xf32>
      %47 = arith.addf %46, %45 : vector<8x32xf32>
      %48 = arith.divf %46, %47 : vector<8x32xf32>
      %49 = arith.mulf %43, %48 : vector<8x32xf32>
      %50 = arith.truncf %49 : vector<8x32xf32> to vector<8x32xbf16>
      %c0_29 = arith.constant 0 : index
      %c0_30 = arith.constant 0 : index
      %51 = vector.load %arg14[%c0_29, %c0_30] : memref<32x128xbf16, #tpu.memory_space<vmem>>, vector<32x128xbf16>
      %cst_31 = arith.constant dense<0.000000e+00> : vector<8x128xf32>
      %52 = tpu.matmul %50, %51, %cst_31 {dimension_numbers = #tpu.dot_dimension_numbers<[1], [0], [0], [1], [0, 0, 1, 1], [], []>} : vector<8x32xbf16>, vector<32x128xbf16>, vector<8x128xf32> -> vector<8x128xf32>
      %53 = vector.broadcast %16 : vector<8x1xf32> to vector<8x128xf32>
      %54 = arith.mulf %52, %53 : vector<8x128xf32>
      %c0_32 = arith.constant 0 : index
      %c0_33 = arith.constant 0 : index
      %55 = vector.load %arg15[%c0_32, %c0_33] : memref<8x128xf32, #tpu.memory_space<vmem>>, vector<8x128xf32>
      tpu.vector_store %arg15[%c0_32, %c0_33], %54 {strides = array<i32>} : memref<8x128xf32, #tpu.memory_space<vmem>>, vector<8x128xf32>,
    } else {
    }
    return
  }
  func.func @transform_0(%arg0: i32, %arg1: i32, %arg2: memref<2xi32, #tpu.memory_space<smem>>, %arg3: memref<2xi32, #tpu.memory_space<smem>>) -> (i32, i32) {
    %0 = arith.index_cast %arg0 : i32 to index
    %1 = memref.load %arg2[%0] : memref<2xi32, #tpu.memory_space<smem>>
    %2 = arith.index_cast %arg0 : i32 to index
    %3 = memref.load %arg3[%2] : memref<2xi32, #tpu.memory_space<smem>>
    %c1_i32 = arith.constant 1 : i32
    %4 = arith.subi %3, %c1_i32 : i32
    %c0_i32 = arith.constant 0 : i32
    %5 = arith.maxsi %4, %c0_i32 : i32
    %6 = arith.minsi %arg1, %5 : i32
    %7 = arith.addi %1, %6 : i32
    %c0_i32_0 = arith.constant 0 : i32
    %c0_i32_1 = arith.constant 0 : i32
    return %c0_i32_0, %7 : i32, i32
  }
  func.func @transform_1(%arg0: i32, %arg1: i32, %arg2: memref<2xi32, #tpu.memory_space<smem>>, %arg3: memref<2xi32, #tpu.memory_space<smem>>) -> (i32, i32) {
    %0 = arith.index_cast %arg0 : i32 to index
    %1 = memref.load %arg2[%0] : memref<2xi32, #tpu.memory_space<smem>>
    %2 = arith.index_cast %arg0 : i32 to index
    %3 = memref.load %arg3[%2] : memref<2xi32, #tpu.memory_space<smem>>
    %c1_i32 = arith.constant 1 : i32
    %4 = arith.subi %3, %c1_i32 : i32
    %c0_i32 = arith.constant 0 : i32
    %5 = arith.maxsi %4, %c0_i32 : i32
    %6 = arith.minsi %arg1, %5 : i32
    %7 = arith.addi %1, %6 : i32
    %c0_i32_0 = arith.constant 0 : i32
    %c0_i32_1 = arith.constant 0 : i32
    return %7, %c0_i32_0 : i32, i32
  }
  func.func @transform_2(%arg0: i32, %arg1: i32, %arg2: memref<2xi32, #tpu.memory_space<smem>>, %arg3: memref<2xi32, #tpu.memory_space<smem>>) -> (i32, i32) {
    %0 = arith.index_cast %arg0 : i32 to index
    %1 = memref.load %arg2[%0] : memref<2xi32, #tpu.memory_space<smem>>
    %2 = arith.index_cast %arg0 : i32 to index
    %3 = memref.load %arg3[%2] : memref<2xi32, #tpu.memory_space<smem>>
    %c1_i32 = arith.constant 1 : i32
    %4 = arith.subi %3, %c1_i32 : i32
    %c0_i32 = arith.constant 0 : i32
    %5 = arith.maxsi %4, %c0_i32 : i32
    %6 = arith.minsi %arg1, %5 : i32
    %7 = arith.addi %1, %6 : i32
    %c0_i32_0 = arith.constant 0 : i32
    %c0_i32_1 = arith.constant 0 : i32
    return %7, %c0_i32_0 : i32, i32
  }
  func.func @transform_3(%arg0: i32, %arg1: i32, %arg2: memref<2xi32, #tpu.memory_space<smem>>, %arg3: memref<2xi32, #tpu.memory_space<smem>>) -> (i32, i32) {
    %c0_i32 = arith.constant 0 : i32
    %c0_i32_0 = arith.constant 0 : i32
    %c0_i32_1 = arith.constant 0 : i32
    return %c0_i32, %c0_i32_0 : i32, i32
  }
  func.func @transform_4(%arg0: i32, %arg1: i32, %arg2: memref<2xi32, #tpu.memory_space<smem>>, %arg3: memref<2xi32, #tpu.memory_space<smem>>) -> (i32, i32) {
    %c0_i32 = arith.constant 0 : i32
    %c0_i32_0 = arith.constant 0 : i32
    %c0_i32_1 = arith.constant 0 : i32
    return %c0_i32, %c0_i32_0 : i32, i32
  }
  func.func @transform_5(%arg0: i32, %arg1: i32, %arg2: memref<2xi32, #tpu.memory_space<smem>>, %arg3: memref<2xi32, #tpu.memory_space<smem>>) -> (i32, i32) {
    %c0_i32 = arith.constant 0 : i32
    %c0_i32_0 = arith.constant 0 : i32
    %c0_i32_1 = arith.constant 0 : i32
    return %c0_i32, %c0_i32_0 : i32, i32
  }
  func.func @transform_6(%arg0: i32, %arg1: i32, %arg2: memref<2xi32, #tpu.memory_space<smem>>, %arg3: memref<2xi32, #tpu.memory_space<smem>>) -> (i32, i32) {
    %c0_i32 = arith.constant 0 : i32
    %c0_i32_0 = arith.constant 0 : i32
    %c0_i32_1 = arith.constant 0 : i32
    return %c0_i32, %c0_i32_0 : i32, i32
  }
  func.func @transform_7(%arg0: i32, %arg1: i32, %arg2: memref<2xi32, #tpu.memory_space<smem>>, %arg3: memref<2xi32, #tpu.memory_space<smem>>) -> (i32, i32) {
    %c0_i32 = arith.constant 0 : i32
    %c0_i32_0 = arith.constant 0 : i32
    %c0_i32_1 = arith.constant 0 : i32
    return %c0_i32, %c0_i32_0 : i32, i32
  }
  func.func @transform_8(%arg0: i32, %arg1: i32, %arg2: memref<2xi32, #tpu.memory_space<smem>>, %arg3: memref<2xi32, #tpu.memory_space<smem>>) -> (i32, i32, i32) {
    %c0_i32 = arith.constant 0 : i32
    %c0_i32_0 = arith.constant 0 : i32
    %c0_i32_1 = arith.constant 0 : i32
    %c0_i32_2 = arith.constant 0 : i32
    return %c0_i32, %c0_i32_0, %c0_i32_1 : i32, i32, i32
  }
  func.func @transform_9(%arg0: i32, %arg1: i32, %arg2: memref<2xi32, #tpu.memory_space<smem>>, %arg3: memref<2xi32, #tpu.memory_space<smem>>) -> (i32, i32, i32) {
    %c0_i32 = arith.constant 0 : i32
    %c0_i32_0 = arith.constant 0 : i32
    %c0_i32_1 = arith.constant 0 : i32
    %c0_i32_2 = arith.constant 0 : i32
    return %c0_i32, %c0_i32_0, %c0_i32_1 : i32, i32, i32
  }
  func.func @transform_10(%arg0: i32, %arg1: i32, %arg2: memref<2xi32, #tpu.memory_space<smem>>, %arg3: memref<2xi32, #tpu.memory_space<smem>>) -> (i32, i32) {
    %c0_i32 = arith.constant 0 : i32
    %c0_i32_0 = arith.constant 0 : i32
    %c0_i32_1 = arith.constant 0 : i32
    return %c0_i32, %c0_i32_0 : i32, i32
  }
  func.func @transform_11(%arg0: i32, %arg1: i32, %arg2: memref<2xi32, #tpu.memory_space<smem>>, %arg3: memref<2xi32, #tpu.memory_space<smem>>) -> (i32, i32) {
    %c0_i32 = arith.constant 0 : i32
    %c0_i32_0 = arith.constant 0 : i32
    return %arg0, %c0_i32 : i32, i32
  }
}

</mosaic_0001>

<llo_original>
// kernel: tpu_custom_call.1
$region0: #{tpu_custom_call.1}
  #allocation0 [shape = 'u32[]', space=smem, size = 0x4, offset = 0x4, fixed_abs, tag = 'smem constant byte address 0x4 - core index']
  #allocation1 [shape = 'u32[144,128]{1,0:T(1,128)}', space=vmem, size = 0x12000, scoped, tag = 'internal scratch']
  #allocation2 [shape = 'f32[8,32]{1,0:T(8,128)}', space=vmem, size = 0x1000, scoped, tag = 'scratch operand']
  #allocation3 [shape = 's32[1]{0}', space=sflag, size = 0x4, scoped, tag = 'scoped memory for tpu_custom_call.1']
  #allocation4 [shape = 'u8[512]{0}', space=smem, size = 0x200, scoped, tag = 'prefetched SMEM operand 0']
  #allocation5 [shape = 'u8[512]{0}', space=smem, size = 0x200, scoped, tag = 'prefetched SMEM operand 1']
  #allocation6 [shape = 'f32[1,1]{1,0:T(1,128)S(1)}', space=vmem, size = 0x200, scoped, tag = 'scoped memory for tpu_custom_call.1']
  %s0 = inlined_call_operand.vmem [shape: s32[2], index: 0, kind: input, shape index: {}]
  %s1 = inlined_call_operand.vmem [shape: s32[2], index: 1, kind: input, shape index: {}]
  %s2 = inlined_call_operand.vmem [shape: s32[1,256], index: 2, kind: input, shape index: {}]
  %s3 = inlined_call_operand.vmem [shape: bf16[256,32], index: 3, kind: input, shape index: {}]
  %s4 = inlined_call_operand.vmem [shape: bf16[256,8], index: 4, kind: input, shape index: {}]
  %s5 = inlined_call_operand.vmem [shape: bf16[8,32], index: 5, kind: input, shape index: {}]
  %s6 = inlined_call_operand.vmem [shape: f32[32,32], index: 6, kind: input, shape index: {}]
  %s7 = inlined_call_operand.vmem [shape: f32[1,32], index: 7, kind: input, shape index: {}]
  %s8 = inlined_call_operand.vmem [shape: f32[32,1], index: 8, kind: input, shape index: {}]
  %s9 = inlined_call_operand.<no memory space> [shape: f32[1,1], index: 9, kind: input, shape index: {}]
  %s10 = inlined_call_operand.vmem [shape: bf16[2,32,32], index: 10, kind: input, shape index: {}]
  %s11 = inlined_call_operand.vmem [shape: f32[2,1,32], index: 11, kind: input, shape index: {}]
  %s12 = inlined_call_operand.vmem [shape: bf16[32,128], index: 12, kind: input, shape index: {}]
  %s13 = inlined_call_operand.hbm [shape: f32[16,128], index: 13, kind: output, shape index: {}]
  %s14 = sld [smem:[#allocation0]]
  $region89: #{tpu_custom_call.1} parent=0
    _
  %s16 = ssub.s32 1, %s14
  %s17 = scalar_select 0, %s16, %s14
  %s18 = sshll.u32 %s0, 4
  %s19 = int_to_ptr.vmem [resolvable:$true] %s18
  %21 = dma.vmem_to_smem %s19, 16, [#allocation4], [#allocation3]
  %s22 = sshll.u32 %s1, 4
  %s23 = int_to_ptr.vmem [resolvable:$true] %s22
  %25 = dma.vmem_to_smem %s23, 16, [#allocation5], [#allocation3]
  %v26 = vstv %s9
  %27 = vst [vmem:[#allocation6] sm:$0x1] %v26
  %28 = dma.done [#allocation3], 32
  %29 = sfence
  $region1: #{tpu_custom_call.1} parent=0
    #allocation7 [shape = 'u8[8192]{0}', space=vmem, size = 0x2000, scoped, tag = 'output window, operand 0']
    #allocation8 [shape = 's32[2]{0}', space=sflag, size = 0x8, scoped, tag = 'scoped memory for tpu_custom_call.1']
    %30 = vsyncpa [#allocation8], 0
    %s31 = scalar_lea.sflag [#allocation8], 1
    %32 = vsyncpa %s31, 0
    loop: start=0, step=1, limit=4
    $region2: #{tpu_custom_call.1} parent=1 // loop_pre_header
      _
    $region3: #{tpu_custom_call.1} parent=1 // loop_header
      %s34 = sphi 0, %s38
      %p35 = scmp.ge.s32.totalorder %s34, 4
      %s41 = sphi 0, %s53
      %s42 = sphi 0, %s49
      %s43 = sphi 0, %s41
      %s44 = sphi 0, %s42
      %s45 = sphi 0, %s43
      %s46 = sphi 0, %s44
      %s72 = sphi 0, %s74
      %s75 = sphi 0, %s72
      %s76 = sphi 0, %s75
      %s92 = sphi 0, %s76
      %s114 = sphi 0, %s116
      %s117 = sphi 0, %s114
      %s118 = sphi 0, %s117
      %s134 = sphi 0, %s118
      %s156 = sphi 0, %s158
      %s159 = sphi 0, %s156
      %s160 = sphi 0, %s159
      %s176 = sphi 0, %s160
      %s180 = sphi 0, %s180
      %s182 = sphi 0, %s180
      %s183 = sphi 0, %s182
      %s197 = sphi 0, %s183
      %s201 = sphi 0, %s201
      %s203 = sphi 0, %s201
      %s204 = sphi 0, %s203
      %s218 = sphi 0, %s204
      %s222 = sphi 0, %s222
      %s224 = sphi 0, %s222
      %s225 = sphi 0, %s224
      %s239 = sphi 0, %s225
      %s243 = sphi 0, %s243
      %s245 = sphi 0, %s243
      %s246 = sphi 0, %s245
      %s260 = sphi 0, %s246
      %s264 = sphi 0, %s264
      %s266 = sphi 0, %s264
      %s267 = sphi 0, %s266
      %s281 = sphi 0, %s267
      %s285 = sphi 0, %s285
      %s287 = sphi 0, %s285
      %s288 = sphi 0, %s287
      %s302 = sphi 0, %s288
      %s306 = sphi 0, %s306
      %s308 = sphi 0, %s306
      %s309 = sphi 0, %s308
      %s323 = sphi 0, %s309
      %s327 = sphi 0, %s327
      %s329 = sphi 0, %s327
      %s330 = sphi 0, %s329
      %s344 = sphi 0, %s330
      %s350 = sphi 0, %s352
      %s353 = sphi 0, %s350
      %s354 = sphi 0, %s353
      %s370 = sphi 0, %s354
    $region4: #{tpu_custom_call.1} parent=1 // loop_header_branch
      %37 = sbr.rel (%p35) target = $region8
    $region5: #{tpu_custom_call.1} parent=1 // loop_body
      %s39 = ssub.s32 %s34, 1
      %s40 = ssub.s32 %s34, 2
      %s47 = sadd.s32 1, %s42
      %p48 = scmp.ge.s32.totalorder %s47, 1
      %s49 = scalar_select %p48, 0, %s47
      %s50 = sadd.s32 1, %s41
      %s51 = scalar_select %p48, %s50, %s41
      %p52 = scmp.ge.s32.totalorder %s51, 2
      %s53 = scalar_select %p52, 0, %s51
      %s54 = sld [smem:[#allocation4 + %s41]]
      %s55 = sld [smem:[#allocation5 + %s41]]
      %s56 = ssub.s32 %s55, 1
      %p57 = scmp.gt.s32.totalorder %s56, 0
      %s58 = scalar_select %p57, %s56, 0
      %p59 = scmp.lt.s32.totalorder %s42, %s58
      %s60 = scalar_select %p59, %s42, %s58
      %s61 = sadd.s32 %s54, %s60
      %s62 = sld [smem:[#allocation4 + %s53]]
      %s63 = sld [smem:[#allocation5 + %s53]]
      %s64 = ssub.s32 %s63, 1
      %p65 = scmp.gt.s32.totalorder %s64, 0
      %s66 = scalar_select %p65, %s64, 0
      %p67 = scmp.lt.s32.totalorder %s49, %s66
      %s68 = scalar_select %p67, %s49, %s66
      %s69 = sadd.s32 %s62, %s68
      %s70 = ssub.s32 %s61, %s69
      %p71 = scmp.eq.s32.totalorder %s70, 0
      %s73 = sadd.s32 %s72, 1
      %s74 = scalar_select %p71, %s72, %s73
      %p77 = pneg %p71
      %p78 = scmp.eq.s32.totalorder %s34, 1
      %p79 = por %p77, %p78
      %p80 = scmp.ne.s32.totalorder %s72, %s75
      %p81 = scmp.eq.s32.totalorder %s34, 0
      %p82 = por %p80, %p81
      %p83 = scmp.ne.s32.totalorder %s72, %s75
      %p84 = scmp.eq.s32.totalorder %s39, 1
      %p85 = por %p83, %p84
      %p86 = scmp.ne.s32.totalorder %s75, %s76
      %p87 = scmp.eq.s32.totalorder %s39, 0
      %p88 = por %p86, %p87
      %p89 = scmp.ne.s32.totalorder %s75, %s76
      %p90 = scmp.eq.s32.totalorder %s40, 1
      %p91 = por %p89, %p90
      %p93 = scmp.ne.s32.totalorder %s76, %s92
      %p94 = scmp.eq.s32.totalorder %s40, 0
      %p95 = por %p93, %p94
      %s96 = sld [smem:[#allocation4 + %s41]]
      %s97 = sld [smem:[#allocation5 + %s41]]
      %s98 = ssub.s32 %s97, 1
      %p99 = scmp.gt.s32.totalorder %s98, 0
      %s100 = scalar_select %p99, %s98, 0
      %p101 = scmp.lt.s32.totalorder %s42, %s100
      %s102 = scalar_select %p101, %s42, %s100
      %s103 = sadd.s32 %s96, %s102
      %s104 = sld [smem:[#allocation4 + %s53]]
      %s105 = sld [smem:[#allocation5 + %s53]]
      %s106 = ssub.s32 %s105, 1
      %p107 = scmp.gt.s32.totalorder %s106, 0
      %s108 = scalar_select %p107, %s106, 0
      %p109 = scmp.lt.s32.totalorder %s49, %s108
      %s110 = scalar_select %p109, %s49, %s108
      %s111 = sadd.s32 %s104, %s110
      %s112 = ssub.s32 %s103, %s111
      %p113 = scmp.eq.s32.totalorder %s112, 0
      %s115 = sadd.s32 %s114, 1
      %s116 = scalar_select %p113, %s114, %s115
      %p119 = pneg %p113
      %p120 = scmp.eq.s32.totalorder %s34, 1
      %p121 = por %p119, %p120
      %p122 = scmp.ne.s32.totalorder %s114, %s117
      %p123 = scmp.eq.s32.totalorder %s34, 0
      %p124 = por %p122, %p123
      %p125 = scmp.ne.s32.totalorder %s114, %s117
      %p126 = scmp.eq.s32.totalorder %s39, 1
      %p127 = por %p125, %p126
      %p128 = scmp.ne.s32.totalorder %s117, %s118
      %p129 = scmp.eq.s32.totalorder %s39, 0
      %p130 = por %p128, %p129
      %p131 = scmp.ne.s32.totalorder %s117, %s118
      %p132 = scmp.eq.s32.totalorder %s40, 1
      %p133 = por %p131, %p132
      %p135 = scmp.ne.s32.totalorder %s118, %s134
      %p136 = scmp.eq.s32.totalorder %s40, 0
      %p137 = por %p135, %p136
      %s138 = sld [smem:[#allocation4 + %s41]]
      %s139 = sld [smem:[#allocation5 + %s41]]
      %s140 = ssub.s32 %s139, 1
      %p141 = scmp.gt.s32.totalorder %s140, 0
      %s142 = scalar_select %p141, %s140, 0
      %p143 = scmp.lt.s32.totalorder %s42, %s142
      %s144 = scalar_select %p143, %s42, %s142
      %s145 = sadd.s32 %s138, %s144
      %s146 = sld [smem:[#allocation4 + %s53]]
      %s147 = sld [smem:[#allocation5 + %s53]]
      %s148 = ssub.s32 %s147, 1
      %p149 = scmp.gt.s32.totalorder %s148, 0
      %s150 = scalar_select %p149, %s148, 0
      %p151 = scmp.lt.s32.totalorder %s49, %s150
      %s152 = scalar_select %p151, %s49, %s150
      %s153 = sadd.s32 %s146, %s152
      %s154 = ssub.s32 %s145, %s153
      %p155 = scmp.eq.s32.totalorder %s154, 0
      %s157 = sadd.s32 %s156, 1
      %s158 = scalar_select %p155, %s156, %s157
      %p161 = pneg %p155
      %p162 = scmp.eq.s32.totalorder %s34, 1
      %p163 = por %p161, %p162
      %p164 = scmp.ne.s32.totalorder %s156, %s159
      %p165 = scmp.eq.s32.totalorder %s34, 0
      %p166 = por %p164, %p165
      %p167 = scmp.ne.s32.totalorder %s156, %s159
      %p168 = scmp.eq.s32.totalorder %s39, 1
      %p169 = por %p167, %p168
      %p170 = scmp.ne.s32.totalorder %s159, %s160
      %p171 = scmp.eq.s32.totalorder %s39, 0
      %p172 = por %p170, %p171
      %p173 = scmp.ne.s32.totalorder %s159, %s160
      %p174 = scmp.eq.s32.totalorder %s40, 1
      %p175 = por %p173, %p174
      %p177 = scmp.ne.s32.totalorder %s160, %s176
      %p178 = scmp.eq.s32.totalorder %s40, 0
      %p179 = por %p177, %p178
      %s181 = sadd.s32 %s180, 1
      %p184 = scmp.eq.s32.totalorder %s34, 1
      %p185 = scmp.ne.s32.totalorder %s180, %s182
      %p186 = scmp.eq.s32.totalorder %s34, 0
      %p187 = por %p185, %p186
      %p188 = scmp.ne.s32.totalorder %s180, %s182
      %p189 = scmp.eq.s32.totalorder %s39, 1
      %p190 = por %p188, %p189
      %p191 = scmp.ne.s32.totalorder %s182, %s183
      %p192 = scmp.eq.s32.totalorder %s39, 0
      %p193 = por %p191, %p192
      %p194 = scmp.ne.s32.totalorder %s182, %s183
      %p195 = scmp.eq.s32.totalorder %s40, 1
      %p196 = por %p194, %p195
      %p198 = scmp.ne.s32.totalorder %s183, %s197
      %p199 = scmp.eq.s32.totalorder %s40, 0
      %p200 = por %p198, %p199
      %s202 = sadd.s32 %s201, 1
      %p205 = scmp.eq.s32.totalorder %s34, 1
      %p206 = scmp.ne.s32.totalorder %s201, %s203
      %p207 = scmp.eq.s32.totalorder %s34, 0
      %p208 = por %p206, %p207
      %p209 = scmp.ne.s32.totalorder %s201, %s203
      %p210 = scmp.eq.s32.totalorder %s39, 1
      %p211 = por %p209, %p210
      %p212 = scmp.ne.s32.totalorder %s203, %s204
      %p213 = scmp.eq.s32.totalorder %s39, 0
      %p214 = por %p212, %p213
      %p215 = scmp.ne.s32.totalorder %s203, %s204
      %p216 = scmp.eq.s32.totalorder %s40, 1
      %p217 = por %p215, %p216
      %p219 = scmp.ne.s32.totalorder %s204, %s218
      %p220 = scmp.eq.s32.totalorder %s40, 0
      %p221 = por %p219, %p220
      %s223 = sadd.s32 %s222, 1
      %p226 = scmp.eq.s32.totalorder %s34, 1
      %p227 = scmp.ne.s32.totalorder %s222, %s224
      %p228 = scmp.eq.s32.totalorder %s34, 0
      %p229 = por %p227, %p228
      %p230 = scmp.ne.s32.totalorder %s222, %s224
      %p231 = scmp.eq.s32.totalorder %s39, 1
      %p232 = por %p230, %p231
      %p233 = scmp.ne.s32.totalorder %s224, %s225
      %p234 = scmp.eq.s32.totalorder %s39, 0
      %p235 = por %p233, %p234
      %p236 = scmp.ne.s32.totalorder %s224, %s225
      %p237 = scmp.eq.s32.totalorder %s40, 1
      %p238 = por %p236, %p237
      %p240 = scmp.ne.s32.totalorder %s225, %s239
      %p241 = scmp.eq.s32.totalorder %s40, 0
      %p242 = por %p240, %p241
      %s244 = sadd.s32 %s243, 1
      %p247 = scmp.eq.s32.totalorder %s34, 1
      %p248 = scmp.ne.s32.totalorder %s243, %s245
      %p249 = scmp.eq.s32.totalorder %s34, 0
      %p250 = por %p248, %p249
      %p251 = scmp.ne.s32.totalorder %s243, %s245
      %p252 = scmp.eq.s32.totalorder %s39, 1
      %p253 = por %p251, %p252
      %p254 = scmp.ne.s32.totalorder %s245, %s246
      %p255 = scmp.eq.s32.totalorder %s39, 0
      %p256 = por %p254, %p255
      %p257 = scmp.ne.s32.totalorder %s245, %s246
      %p258 = scmp.eq.s32.totalorder %s40, 1
      %p259 = por %p257, %p258
      %p261 = scmp.ne.s32.totalorder %s246, %s260
      %p262 = scmp.eq.s32.totalorder %s40, 0
      %p263 = por %p261, %p262
      %s265 = sadd.s32 %s264, 1
      %p268 = scmp.eq.s32.totalorder %s34, 1
      %p269 = scmp.ne.s32.totalorder %s264, %s266
      %p270 = scmp.eq.s32.totalorder %s34, 0
      %p271 = por %p269, %p270
      %p272 = scmp.ne.s32.totalorder %s264, %s266
      %p273 = scmp.eq.s32.totalorder %s39, 1
      %p274 = por %p272, %p273
      %p275 = scmp.ne.s32.totalorder %s266, %s267
      %p276 = scmp.eq.s32.totalorder %s39, 0
      %p277 = por %p275, %p276
      %p278 = scmp.ne.s32.totalorder %s266, %s267
      %p279 = scmp.eq.s32.totalorder %s40, 1
      %p280 = por %p278, %p279
      %p282 = scmp.ne.s32.totalorder %s267, %s281
      %p283 = scmp.eq.s32.totalorder %s40, 0
      %p284 = por %p282, %p283
      %s286 = sadd.s32 %s285, 1
      %p289 = scmp.eq.s32.totalorder %s34, 1
      %p290 = scmp.ne.s32.totalorder %s285, %s287
      %p291 = scmp.eq.s32.totalorder %s34, 0
      %p292 = por %p290, %p291
      %p293 = scmp.ne.s32.totalorder %s285, %s287
      %p294 = scmp.eq.s32.totalorder %s39, 1
      %p295 = por %p293, %p294
      %p296 = scmp.ne.s32.totalorder %s287, %s288
      %p297 = scmp.eq.s32.totalorder %s39, 0
      %p298 = por %p296, %p297
      %p299 = scmp.ne.s32.totalorder %s287, %s288
      %p300 = scmp.eq.s32.totalorder %s40, 1
      %p301 = por %p299, %p300
      %p303 = scmp.ne.s32.totalorder %s288, %s302
      %p304 = scmp.eq.s32.totalorder %s40, 0
      %p305 = por %p303, %p304
      %s307 = sadd.s32 %s306, 1
      %p310 = scmp.eq.s32.totalorder %s34, 1
      %p311 = scmp.ne.s32.totalorder %s306, %s308
      %p312 = scmp.eq.s32.totalorder %s34, 0
      %p313 = por %p311, %p312
      %p314 = scmp.ne.s32.totalorder %s306, %s308
      %p315 = scmp.eq.s32.totalorder %s39, 1
      %p316 = por %p314, %p315
      %p317 = scmp.ne.s32.totalorder %s308, %s309
      %p318 = scmp.eq.s32.totalorder %s39, 0
      %p319 = por %p317, %p318
      %p320 = scmp.ne.s32.totalorder %s308, %s309
      %p321 = scmp.eq.s32.totalorder %s40, 1
      %p322 = por %p320, %p321
      %p324 = scmp.ne.s32.totalorder %s309, %s323
      %p325 = scmp.eq.s32.totalorder %s40, 0
      %p326 = por %p324, %p325
      %s328 = sadd.s32 %s327, 1
      %p331 = scmp.eq.s32.totalorder %s34, 1
      %p332 = scmp.ne.s32.totalorder %s327, %s329
      %p333 = scmp.eq.s32.totalorder %s34, 0
      %p334 = por %p332, %p333
      %p335 = scmp.ne.s32.totalorder %s327, %s329
      %p336 = scmp.eq.s32.totalorder %s39, 1
      %p337 = por %p335, %p336
      %p338 = scmp.ne.s32.totalorder %s329, %s330
      %p339 = scmp.eq.s32.totalorder %s39, 0
      %p340 = por %p338, %p339
      %p341 = scmp.ne.s32.totalorder %s329, %s330
      %p342 = scmp.eq.s32.totalorder %s40, 1
      %p343 = por %p341, %p342
      %p345 = scmp.ne.s32.totalorder %s330, %s344
      %p346 = scmp.eq.s32.totalorder %s40, 0
      %p347 = por %p345, %p346
      %s348 = ssub.s32 %s41, %s53
      %p349 = scmp.eq.s32.totalorder %s348, 0
      %s351 = sadd.s32 %s350, 1
      %s352 = scalar_select %p349, %s350, %s351
      %p355 = pneg %p349
      %p356 = scmp.eq.s32.totalorder %s34, 1
      %p357 = por %p355, %p356
      %p358 = scmp.ne.s32.totalorder %s350, %s353
      %p359 = scmp.eq.s32.totalorder %s34, 0
      %p360 = por %p358, %p359
      %p361 = scmp.ne.s32.totalorder %s350, %s353
      %p362 = scmp.eq.s32.totalorder %s39, 1
      %p363 = por %p361, %p362
      %p364 = scmp.ne.s32.totalorder %s353, %s354
      %p365 = scmp.eq.s32.totalorder %s39, 0
      %p366 = por %p364, %p365
      %p367 = scmp.ne.s32.totalorder %s353, %s354
      %p368 = scmp.eq.s32.totalorder %s40, 1
      %p369 = por %p367, %p368
      %p371 = scmp.ne.s32.totalorder %s354, %s370
      %p372 = scmp.eq.s32.totalorder %s40, 0
      %p373 = por %p371, %p372
      %p374 = scmp.le.s32.totalorder 1, %s34
      %p375 = scmp.lt.s32.totalorder %s34, 3
      %p376 = pnand %p374, %p375
      %p377 = pneg %p376
      // Predicated region
      $region9: #{tpu_custom_call.1} parent=5 // pred_check
        _
      $region10: #{tpu_custom_call.1} parent=5 // pred_check_branch
        %379 = sbr.rel (%p376) target = $region12
      $region11: #{tpu_custom_call.1} parent=5 // pred_region
        %s380 = ssub.s32 %s34, 1
        // Predicated region
        $region13: #{tpu_custom_call.1} parent=11 // pred_check
          %p381 = pneg %p193
        $region14: #{tpu_custom_call.1} parent=11 // pred_check_branch
          %383 = sbr.rel (%p381) target = $region16
        $region15: #{tpu_custom_call.1} parent=11 // pred_region
          _
        $region16: #{tpu_custom_call.1} parent=11 // pred_fallthru
          _
        // Predicated region
        $region17: #{tpu_custom_call.1} parent=11 // pred_check
          %p384 = pneg %p214
        $region18: #{tpu_custom_call.1} parent=11 // pred_check_branch
          %386 = sbr.rel (%p384) target = $region20
        $region19: #{tpu_custom_call.1} parent=11 // pred_region
          _
        $region20: #{tpu_custom_call.1} parent=11 // pred_fallthru
          _
        // Predicated region
        $region21: #{tpu_custom_call.1} parent=11 // pred_check
          %p387 = pneg %p235
        $region22: #{tpu_custom_call.1} parent=11 // pred_check_branch
          %389 = sbr.rel (%p387) target = $region24
        $region23: #{tpu_custom_call.1} parent=11 // pred_region
          _
        $region24: #{tpu_custom_call.1} parent=11 // pred_fallthru
          _
        // Predicated region
        $region25: #{tpu_custom_call.1} parent=11 // pred_check
          %p390 = pneg %p256
        $region26: #{tpu_custom_call.1} parent=11 // pred_check_branch
          %392 = sbr.rel (%p390) target = $region28
        $region27: #{tpu_custom_call.1} parent=11 // pred_region
          _
        $region28: #{tpu_custom_call.1} parent=11 // pred_fallthru
          _
        // Predicated region
        $region29: #{tpu_custom_call.1} parent=11 // pred_check
          %p393 = pneg %p277
        $region30: #{tpu_custom_call.1} parent=11 // pred_check_branch
          %395 = sbr.rel (%p393) target = $region32
        $region31: #{tpu_custom_call.1} parent=11 // pred_region
          _
        $region32: #{tpu_custom_call.1} parent=11 // pred_fallthru
          _
        // Predicated region
        $region33: #{tpu_custom_call.1} parent=11 // pred_check
          %p396 = pneg %p298
        $region34: #{tpu_custom_call.1} parent=11 // pred_check_branch
          %398 = sbr.rel (%p396) target = $region36
        $region35: #{tpu_custom_call.1} parent=11 // pred_region
          _
        $region36: #{tpu_custom_call.1} parent=11 // pred_fallthru
          _
        // Predicated region
        $region37: #{tpu_custom_call.1} parent=11 // pred_check
          %p399 = pneg %p319
        $region38: #{tpu_custom_call.1} parent=11 // pred_check_branch
          %401 = sbr.rel (%p399) target = $region40
        $region39: #{tpu_custom_call.1} parent=11 // pred_region
          _
        $region40: #{tpu_custom_call.1} parent=11 // pred_fallthru
          _
        // Predicated region
        $region41: #{tpu_custom_call.1} parent=11 // pred_check
          %p402 = pneg %p340
        $region42: #{tpu_custom_call.1} parent=11 // pred_check_branch
          %404 = sbr.rel (%p402) target = $region44
        $region43: #{tpu_custom_call.1} parent=11 // pred_region
          _
        $region44: #{tpu_custom_call.1} parent=11 // pred_fallthru
          _
      $region12: #{tpu_custom_call.1} parent=5 // pred_fallthru
        _
      %p405 = scmp.lt.s32.totalorder %s34, 2
      // Predicated region
      $region45: #{tpu_custom_call.1} parent=5 // pred_check
        %p406 = pneg %p405
      $region46: #{tpu_custom_call.1} parent=5 // pred_check_branch
        %408 = sbr.rel (%p406) target = $region48
      $region47: #{tpu_custom_call.1} parent=5 // pred_region
        // Predicated region
        $region49: #{tpu_custom_call.1} parent=47 // pred_check
          %p409 = pneg %p82
        $region50: #{tpu_custom_call.1} parent=47 // pred_check_branch
          %411 = sbr.rel (%p409) target = $region52
        $region51: #{tpu_custom_call.1} parent=47 // pred_region
          %s412 = sld [smem:[#allocation4 + %s41]]
          %s413 = sld [smem:[#allocation5 + %s41]]
          %s414 = ssub.s32 %s413, 1
          %p415 = scmp.gt.s32.totalorder %s414, 0
          %s416 = scalar_select %p415, %s414, 0
          %p417 = scmp.lt.s32.totalorder %s42, %s416
          %s418 = scalar_select %p417, %s42, %s416
          %s419 = sadd.s32 %s412, %s418
          %s420 = smul.u32 2, %s419
          %p421 = scmp.lt.s32.totalorder %s420, 1
          %s422 = scalar_select %p421, %s420, 1
          %s423 = scalar_lea.vmem %s2, %s422
          %s424 = sld [smem:[#allocation4 + %s41]]
          %s425 = sld [smem:[#allocation5 + %s41]]
          %s426 = ssub.s32 %s425, 1
          %p427 = scmp.gt.s32.totalorder %s426, 0
          %s428 = scalar_select %p427, %s426, 0
          %p429 = scmp.lt.s32.totalorder %s42, %s428
          %s430 = scalar_select %p429, %s42, %s428
          %s431 = sadd.s32 %s424, %s430
          %s432 = smul.u32 2, %s431
        $region52: #{tpu_custom_call.1} parent=47 // pred_fallthru
          _
        // Predicated region
        $region53: #{tpu_custom_call.1} parent=47 // pred_check
          %p433 = pneg %p124
        $region54: #{tpu_custom_call.1} parent=47 // pred_check_branch
          %435 = sbr.rel (%p433) target = $region56
        $region55: #{tpu_custom_call.1} parent=47 // pred_region
          %s436 = sld [smem:[#allocation4 + %s41]]
          %s437 = sld [smem:[#allocation5 + %s41]]
          %s438 = ssub.s32 %s437, 1
          %p439 = scmp.gt.s32.totalorder %s438, 0
          %s440 = scalar_select %p439, %s438, 0
          %p441 = scmp.lt.s32.totalorder %s42, %s440
          %s442 = scalar_select %p441, %s42, %s440
          %s443 = sadd.s32 %s436, %s442
          %s444 = smul.u32 32, %s443
          %p445 = scmp.lt.s32.totalorder %s444, 31
          %s446 = scalar_select %p445, %s444, 31
          %s447 = smul.addr %s446, 4
          %s448 = scalar_lea.vmem %s3, %s447
          %s449 = sld [smem:[#allocation4 + %s41]]
          %s450 = sld [smem:[#allocation5 + %s41]]
          %s451 = ssub.s32 %s450, 1
          %p452 = scmp.gt.s32.totalorder %s451, 0
          %s453 = scalar_select %p452, %s451, 0
          %p454 = scmp.lt.s32.totalorder %s42, %s453
          %s455 = scalar_select %p454, %s42, %s453
          %s456 = sadd.s32 %s449, %s455
          %s457 = smul.u32 32, %s456
        $region56: #{tpu_custom_call.1} parent=47 // pred_fallthru
          _
        // Predicated region
        $region57: #{tpu_custom_call.1} parent=47 // pred_check
          %p458 = pneg %p166
        $region58: #{tpu_custom_call.1} parent=47 // pred_check_branch
          %460 = sbr.rel (%p458) target = $region60
        $region59: #{tpu_custom_call.1} parent=47 // pred_region
          %s461 = sld [smem:[#allocation4 + %s41]]
          %s462 = sld [smem:[#allocation5 + %s41]]
          %s463 = ssub.s32 %s462, 1
          %p464 = scmp.gt.s32.totalorder %s463, 0
          %s465 = scalar_select %p464, %s463, 0
          %p466 = scmp.lt.s32.totalorder %s42, %s465
          %s467 = scalar_select %p466, %s42, %s465
          %s468 = sadd.s32 %s461, %s467
          %s469 = smul.u32 32, %s468
          %p470 = scmp.lt.s32.totalorder %s469, 31
          %s471 = scalar_select %p470, %s469, 31
          %s472 = smul.addr %s471, 4
          %s473 = scalar_lea.vmem %s4, %s472
          %s474 = sld [smem:[#allocation4 + %s41]]
          %s475 = sld [smem:[#allocation5 + %s41]]
          %s476 = ssub.s32 %s475, 1
          %p477 = scmp.gt.s32.totalorder %s476, 0
          %s478 = scalar_select %p477, %s476, 0
          %p479 = scmp.lt.s32.totalorder %s42, %s478
          %s480 = scalar_select %p479, %s42, %s478
          %s481 = sadd.s32 %s474, %s480
          %s482 = smul.u32 32, %s481
        $region60: #{tpu_custom_call.1} parent=47 // pred_fallthru
          _
      $region48: #{tpu_custom_call.1} parent=5 // pred_fallthru
        _
      %p483 = scmp.le.s32.totalorder 1, %s34
      %p484 = scmp.lt.s32.totalorder %s34, 3
      %p485 = pnand %p483, %p484
      %p486 = pneg %p485
      // Predicated region
      $region61: #{tpu_custom_call.1} parent=5 // pred_check
        _
      $region62: #{tpu_custom_call.1} parent=5 // pred_check_branch
        %488 = sbr.rel (%p485) target = $region64
      $region63: #{tpu_custom_call.1} parent=5 // pred_region
        %s489 = ssub.s32 %s34, 1
        %s490 = sld [smem:[#allocation4 + %s43]]
        %s491 = sld [smem:[#allocation5 + %s43]]
        %s492 = ssub.s32 %s491, 1
        %p493 = scmp.gt.s32.totalorder %s492, 0
        %s494 = scalar_select %p493, %s492, 0
        %p495 = scmp.lt.s32.totalorder %s44, %s494
        %s496 = scalar_select %p495, %s44, %s494
        %s497 = sadd.s32 %s490, %s496
        %s498 = smul.u32 2, %s497
        %p499 = scmp.lt.s32.totalorder %s498, 1
        %s500 = scalar_select %p499, %s498, 1
        %s501 = scalar_lea.vmem %s2, %s500
        %p502 = pneg %p88
        %p503 = pneg %p85
        %s504 = sld [smem:[#allocation4 + %s43]]
        %s505 = sld [smem:[#allocation5 + %s43]]
        %s506 = ssub.s32 %s505, 1
        %p507 = scmp.gt.s32.totalorder %s506, 0
        %s508 = scalar_select %p507, %s506, 0
        %p509 = scmp.lt.s32.totalorder %s44, %s508
        %s510 = scalar_select %p509, %s44, %s508
        %s511 = sadd.s32 %s504, %s510
        %s512 = smul.u32 32, %s511
        %p513 = scmp.lt.s32.totalorder %s512, 31
        %s514 = scalar_select %p513, %s512, 31
        %s515 = smul.addr %s514, 4
        %s516 = scalar_lea.vmem %s3, %s515
        %p517 = pneg %p130
        %p518 = pneg %p127
        %s519 = sld [smem:[#allocation4 + %s43]]
        %s520 = sld [smem:[#allocation5 + %s43]]
        %s521 = ssub.s32 %s520, 1
        %p522 = scmp.gt.s32.totalorder %s521, 0
        %s523 = scalar_select %p522, %s521, 0
        %p524 = scmp.lt.s32.totalorder %s44, %s523
        %s525 = scalar_select %p524, %s44, %s523
        %s526 = sadd.s32 %s519, %s525
        %s527 = smul.u32 32, %s526
        %p528 = scmp.lt.s32.totalorder %s527, 31
        %s529 = scalar_select %p528, %s527, 31
        %s530 = smul.addr %s529, 4
        %s531 = scalar_lea.vmem %s4, %s530
        %p532 = pneg %p172
        %p533 = pneg %p169
        %p534 = pneg %p193
        %p535 = pneg %p190
        %p536 = pneg %p214
        %p537 = pneg %p211
        %p538 = pneg %p235
        %p539 = pneg %p232
        %p540 = pneg %p256
        %p541 = pneg %p253
        %p542 = pneg %p277
        %p543 = pneg %p274
        %p544 = pneg %p298
        %p545 = pneg %p295
        %p546 = pneg %p319
        %p547 = pneg %p316
        %p548 = pneg %p340
        %p549 = pneg %p337
        %p550 = pneg %p366
        %p551 = pneg %p363
        %s552 = sand.u32 %s353, 1
        %s553 = scalar_lea.sflag [#allocation8], %s552
        %s554 = sand.u32 %s353, 1
        %s555 = smul.addr %s554, 8
        %s556 = scalar_lea.vmem [#allocation7], %s555
        %s557 = sld [smem:[#allocation4 + %s43]]
        %s558 = sld [smem:[#allocation5 + %s43]]
        %s559 = ssub.s32 %s558, 1
        %p560 = scmp.gt.s32.totalorder %s559, 0
        %s561 = scalar_select %p560, %s559, 0
        %p562 = scmp.lt.s32.totalorder %s44, %s561
        %s563 = scalar_select %p562, %s44, %s561
        %s564 = sadd.s32 %s557, %s563
        %s565 = smul.u32 2, %s564
        %p566 = scmp.lt.s32.totalorder %s565, 1
        %s567 = scalar_select %p566, %s565, 1
        %s568 = scalar_lea.vmem %s2, %s567
        %s569 = sld [smem:[#allocation4 + %s43]]
        %s570 = sld [smem:[#allocation5 + %s43]]
        %s571 = ssub.s32 %s570, 1
        %p572 = scmp.gt.s32.totalorder %s571, 0
        %s573 = scalar_select %p572, %s571, 0
        %p574 = scmp.lt.s32.totalorder %s44, %s573
        %s575 = scalar_select %p574, %s44, %s573
        %s576 = sadd.s32 %s569, %s575
        %s577 = smul.u32 2, %s576
        %s578 = sld [smem:[#allocation4 + %s43]]
        %s579 = sld [smem:[#allocation5 + %s43]]
        %s580 = ssub.s32 %s579, 1
        %p581 = scmp.gt.s32.totalorder %s580, 0
        %s582 = scalar_select %p581, %s580, 0
        %p583 = scmp.lt.s32.totalorder %s44, %s582
        %s584 = scalar_select %p583, %s44, %s582
        %s585 = sadd.s32 %s578, %s584
        %s586 = smul.u32 32, %s585
        %p587 = scmp.lt.s32.totalorder %s586, 31
        %s588 = scalar_select %p587, %s586, 31
        %s589 = smul.addr %s588, 4
        %s590 = scalar_lea.vmem %s3, %s589
        %s591 = sld [smem:[#allocation4 + %s43]]
        %s592 = sld [smem:[#allocation5 + %s43]]
        %s593 = ssub.s32 %s592, 1
        %p594 = scmp.gt.s32.totalorder %s593, 0
        %s595 = scalar_select %p594, %s593, 0
        %p596 = scmp.lt.s32.totalorder %s44, %s595
        %s597 = scalar_select %p596, %s44, %s595
        %s598 = sadd.s32 %s591, %s597
        %s599 = smul.u32 32, %s598
        %s600 = sld [smem:[#allocation4 + %s43]]
        %s601 = sld [smem:[#allocation5 + %s43]]
        %s602 = ssub.s32 %s601, 1
        %p603 = scmp.gt.s32.totalorder %s602, 0
        %s604 = scalar_select %p603, %s602, 0
        %p605 = scmp.lt.s32.totalorder %s44, %s604
        %s606 = scalar_select %p605, %s44, %s604
        %s607 = sadd.s32 %s600, %s606
        %s608 = smul.u32 32, %s607
        %p609 = scmp.lt.s32.totalorder %s608, 31
        %s610 = scalar_select %p609, %s608, 31
        %s611 = smul.addr %s610, 4
        %s612 = scalar_lea.vmem %s4, %s611
        %s613 = sld [smem:[#allocation4 + %s43]]
        %s614 = sld [smem:[#allocation5 + %s43]]
        %s615 = ssub.s32 %s614, 1
        %p616 = scmp.gt.s32.totalorder %s615, 0
        %s617 = scalar_select %p616, %s615, 0
        %p618 = scmp.lt.s32.totalorder %s44, %s617
        %s619 = scalar_select %p618, %s44, %s617
        %s620 = sadd.s32 %s613, %s619
        %s621 = smul.u32 32, %s620
        %p623 = scmp.eq.s32.totalorder %s44, 0
        // Predicated region
        $region65: #{tpu_custom_call.1} parent=63 // pred_check
          %p624 = pneg %p623
        $region66: #{tpu_custom_call.1} parent=63 // pred_check_branch
          %626 = sbr.rel (%p624) target = $region68
        $region67: #{tpu_custom_call.1} parent=63 // pred_region
          %vm627 = vcmask 261120
          %628 = vst.msk [vmem:[#allocation2] sm:$0xff] %vm627, 0.0
        $region68: #{tpu_custom_call.1} parent=63 // pred_fallthru
          _
        %s629 = sld [smem:[#allocation5 + %s43]]
        %p630 = scmp.lt.s32.totalorder %s44, %s629
        // Predicated region
        $region69: #{tpu_custom_call.1} parent=63 // pred_check
          %p631 = pneg %p630
        $region70: #{tpu_custom_call.1} parent=63 // pred_check_branch
          %633 = sbr.rel (%p631) target = $region72
        $region71: #{tpu_custom_call.1} parent=63 // pred_region
          %v634 = vld [vmem:[%s612] sm:$0xf]
          %v635 = vld [vmem:[%s612 + $0x4] sm:$0xf]
          %v636 = vld [vmem:[%s612 + $0x8] sm:$0xf]
          %v637 = vld [vmem:[%s612 + $0xc] sm:$0xf]
          %v638 = vld [vmem:[%s612 + $0x10] sm:$0xf]
          %v639 = vld [vmem:[%s612 + $0x14] sm:$0xf]
          %v640 = vld [vmem:[%s612 + $0x18] sm:$0xf]
          %v641 = vld [vmem:[%s612 + $0x1c] sm:$0xf]
          %v642 = vld [vmem:[%s612 + $0x20] sm:$0xf]
          %v643 = vld [vmem:[%s612 + $0x24] sm:$0xf]
          %v644 = vld [vmem:[%s612 + $0x28] sm:$0xf]
          %v645 = vld [vmem:[%s612 + $0x2c] sm:$0xf]
          %v646 = vld [vmem:[%s612 + $0x30] sm:$0xf]
          %v647 = vld [vmem:[%s612 + $0x34] sm:$0xf]
          %v648 = vld [vmem:[%s612 + $0x38] sm:$0xf]
          %v649 = vld [vmem:[%s612 + $0x3c] sm:$0xf]
          %v650 = vld [vmem:[%s612 + $0x40] sm:$0xf]
          %v651 = vld [vmem:[%s612 + $0x44] sm:$0xf]
          %v652 = vld [vmem:[%s612 + $0x48] sm:$0xf]
          %v653 = vld [vmem:[%s612 + $0x4c] sm:$0xf]
          %v654 = vld [vmem:[%s612 + $0x50] sm:$0xf]
          %v655 = vld [vmem:[%s612 + $0x54] sm:$0xf]
          %v656 = vld [vmem:[%s612 + $0x58] sm:$0xf]
          %v657 = vld [vmem:[%s612 + $0x5c] sm:$0xf]
          %v658 = vld [vmem:[%s612 + $0x60] sm:$0xf]
          %v659 = vld [vmem:[%s612 + $0x64] sm:$0xf]
          %v660 = vld [vmem:[%s612 + $0x68] sm:$0xf]
          %v661 = vld [vmem:[%s612 + $0x6c] sm:$0xf]
          %v662 = vld [vmem:[%s612 + $0x70] sm:$0xf]
          %v663 = vld [vmem:[%s612 + $0x74] sm:$0xf]
          %v664 = vld [vmem:[%s612 + $0x78] sm:$0xf]
          %v665 = vld [vmem:[%s612 + $0x7c] sm:$0xf]
          %v666 = vld [vmem:[%s5] sm:$0xf]
          %v699 = vunpack.c.l.b16 %v634
          %v700 = vunpack.c.l.b16 %v635
          %v701 = vunpack.c.l.b16 %v636
          %v702 = vunpack.c.l.b16 %v637
          %v703 = vunpack.c.l.b16 %v638
          %v704 = vunpack.c.l.b16 %v639
          %v705 = vunpack.c.l.b16 %v640
          %v706 = vunpack.c.l.b16 %v641
          %v707 = vunpack.c.l.b16 %v642
          %v708 = vunpack.c.l.b16 %v643
          %v709 = vunpack.c.l.b16 %v644
          %v710 = vunpack.c.l.b16 %v645
          %v711 = vunpack.c.l.b16 %v646
          %v712 = vunpack.c.l.b16 %v647
          %v713 = vunpack.c.l.b16 %v648
          %v714 = vunpack.c.l.b16 %v649
          %v715 = vunpack.c.l.b16 %v650
          %v716 = vunpack.c.l.b16 %v651
          %v717 = vunpack.c.l.b16 %v652
          %v718 = vunpack.c.l.b16 %v653
          %v719 = vunpack.c.l.b16 %v654
          %v720 = vunpack.c.l.b16 %v655
          %v721 = vunpack.c.l.b16 %v656
          %v722 = vunpack.c.l.b16 %v657
          %v723 = vunpack.c.l.b16 %v658
          %v724 = vunpack.c.l.b16 %v659
          %v725 = vunpack.c.l.b16 %v660
          %v726 = vunpack.c.l.b16 %v661
          %v727 = vunpack.c.l.b16 %v662
          %v728 = vunpack.c.l.b16 %v663
          %v729 = vunpack.c.l.b16 %v664
          %v730 = vunpack.c.l.b16 %v665
          %v731 = vpack.c.b16 %v700, %v699
          %v732 = vpack.c.b16 %v702, %v701
          %v733 = vpack.c.b16 %v704, %v703
          %v734 = vpack.c.b16 %v706, %v705
          %v735 = vpack.c.b16 %v708, %v707
          %v736 = vpack.c.b16 %v710, %v709
          %v737 = vpack.c.b16 %v712, %v711
          %v738 = vpack.c.b16 %v714, %v713
          %v739 = vpack.c.b16 %v716, %v715
          %v740 = vpack.c.b16 %v718, %v717
          %v741 = vpack.c.b16 %v720, %v719
          %v742 = vpack.c.b16 %v722, %v721
          %v743 = vpack.c.b16 %v724, %v723
          %v744 = vpack.c.b16 %v726, %v725
          %v745 = vpack.c.b16 %v728, %v727
          %v746 = vpack.c.b16 %v730, %v729
          %vm747 = vcmask 64512
          %v749 = vsel %vm747, %v731, 0
          %v752 = vsel %vm747, %v732, 0
          %v755 = vsel %vm747, %v733, 0
          %v758 = vsel %vm747, %v734, 0
          %v761 = vsel %vm747, %v735, 0
          %v764 = vsel %vm747, %v736, 0
          %v767 = vsel %vm747, %v737, 0
          %v770 = vsel %vm747, %v738, 0
          %v773 = vsel %vm747, %v739, 0
          %v776 = vsel %vm747, %v740, 0
          %v779 = vsel %vm747, %v741, 0
          %v782 = vsel %vm747, %v742, 0
          %v785 = vsel %vm747, %v743, 0
          %v788 = vsel %vm747, %v744, 0
          %v791 = vsel %vm747, %v745, 0
          %v794 = vsel %vm747, %v746, 0
          %vm796 = vcmask 1043456
          %v798 = vsel %vm796, %v666, 0
          %800 = vmatprep.subr.bf16.mxu0 0
          %801 = vmatpush1.bf16.msra.mxu0 %v798
          %802 = vmatprep.subr.bf16.mxu0 0
          %803 = vmatpush1.bf16.msra.mxu0 0
          %804 = vmatprep.subr.bf16.mxu0 0
          %805 = vmatpush1.bf16.msra.mxu0 0
          %806 = vmatprep.subr.bf16.mxu0 0
          %807 = vmatpush1.bf16.msra.mxu0 0
          %808 = vmatprep.subr.bf16.mxu0 0
          %809 = vmatpush1.bf16.msra.mxu0 0
          %810 = vmatprep.subr.bf16.mxu0 0
          %811 = vmatpush1.bf16.msra.mxu0 0
          %812 = vmatprep.subr.bf16.mxu0 0
          %813 = vmatpush1.bf16.msra.mxu0 0
          %814 = vmatprep.subr.bf16.mxu0 0
          %815 = vmatpush1.bf16.msra.mxu0 0
          %816 = vmatprep.subr.bf16.mxu0 0
          %817 = vmatpush1.bf16.msra.mxu0 0
          %818 = vmatprep.subr.bf16.mxu0 0
          %819 = vmatpush1.bf16.msra.mxu0 0
          %820 = vmatprep.subr.bf16.mxu0 0
          %821 = vmatpush1.bf16.msra.mxu0 0
          %822 = vmatprep.subr.bf16.mxu0 0
          %823 = vmatpush1.bf16.msra.mxu0 0
          %824 = vmatprep.subr.bf16.mxu0 0
          %825 = vmatpush1.bf16.msra.mxu0 0
          %826 = vmatprep.subr.bf16.mxu0 0
          %827 = vmatpush1.bf16.msra.mxu0 0
          %828 = vmatprep.subr.bf16.mxu0 0
          %829 = vmatpush1.bf16.msra.mxu0 0
          %830 = vmatprep.subr.bf16.mxu0 0
          %831 = vmatpush1.bf16.msra.mxu0 0
          %832 = vmatprep.mubr.bf16.mxu0 0
          %833 = vmatmul.mubr.bf16.gmra.mrb[0].mxu0 %v749
          %v834 = vpop.f32.mrb[0].mxu0
          %v835 = vadd.f32 0.0, %v834
          %v836 = vpop.f32.mrb[0].mxu0
          %v837 = vpop.f32.mrb[0].mxu0
          %v838 = vadd.f32 0.0, %v837
          %v839 = vpop.f32.mrb[0].mxu0
          %840 = vmatprep.mubr.bf16.mxu0 0
          %841 = vmatmul.mubr.bf16.gmra.mrb[0].mxu0 %v752
          %v842 = vpop.f32.mrb[0].mxu0
          %v843 = vadd.f32 0.0, %v842
          %v844 = vpop.f32.mrb[0].mxu0
          %v845 = vpop.f32.mrb[0].mxu0
          %v846 = vadd.f32 0.0, %v845
          %v847 = vpop.f32.mrb[0].mxu0
          %848 = vmatprep.mubr.bf16.mxu0 0
          %849 = vmatmul.mubr.bf16.gmra.mrb[0].mxu0 %v755
          %v850 = vpop.f32.mrb[0].mxu0
          %v851 = vadd.f32 0.0, %v850
          %v852 = vpop.f32.mrb[0].mxu0
          %v853 = vpop.f32.mrb[0].mxu0
          %v854 = vadd.f32 0.0, %v853
          %v855 = vpop.f32.mrb[0].mxu0
          %856 = vmatprep.mubr.bf16.mxu0 0
          %857 = vmatmul.mubr.bf16.gmra.mrb[0].mxu0 %v758
          %v858 = vpop.f32.mrb[0].mxu0
          %v859 = vadd.f32 0.0, %v858
          %v860 = vpop.f32.mrb[0].mxu0
          %v861 = vpop.f32.mrb[0].mxu0
          %v862 = vadd.f32 0.0, %v861
          %v863 = vpop.f32.mrb[0].mxu0
          %864 = vmatprep.mubr.bf16.mxu0 0
          %865 = vmatmul.mubr.bf16.gmra.mrb[0].mxu0 %v761
          %v866 = vpop.f32.mrb[0].mxu0
          %v867 = vadd.f32 0.0, %v866
          %v868 = vpop.f32.mrb[0].mxu0
          %v869 = vpop.f32.mrb[0].mxu0
          %v870 = vadd.f32 0.0, %v869
          %v871 = vpop.f32.mrb[0].mxu0
          %872 = vmatprep.mubr.bf16.mxu0 0
          %873 = vmatmul.mubr.bf16.gmra.mrb[0].mxu0 %v764
          %v874 = vpop.f32.mrb[0].mxu0
          %v875 = vadd.f32 0.0, %v874
          %v876 = vpop.f32.mrb[0].mxu0
          %v877 = vpop.f32.mrb[0].mxu0
          %v878 = vadd.f32 0.0, %v877
          %v879 = vpop.f32.mrb[0].mxu0
          %880 = vmatprep.mubr.bf16.mxu0 0
          %881 = vmatmul.mubr.bf16.gmra.mrb[0].mxu0 %v767
          %v882 = vpop.f32.mrb[0].mxu0
          %v883 = vadd.f32 0.0, %v882
          %v884 = vpop.f32.mrb[0].mxu0
          %v885 = vpop.f32.mrb[0].mxu0
          %v886 = vadd.f32 0.0, %v885
          %v887 = vpop.f32.mrb[0].mxu0
          %888 = vmatprep.mubr.bf16.mxu0 0
          %889 = vmatmul.mubr.bf16.gmra.mrb[0].mxu0 %v770
          %v890 = vpop.f32.mrb[0].mxu0
          %v891 = vadd.f32 0.0, %v890
          %v892 = vpop.f32.mrb[0].mxu0
          %v893 = vpop.f32.mrb[0].mxu0
          %v894 = vadd.f32 0.0, %v893
          %v895 = vpop.f32.mrb[0].mxu0
          %896 = vmatprep.mubr.bf16.mxu0 0
          %897 = vmatmul.mubr.bf16.gmra.mrb[0].mxu0 %v773
          %v898 = vpop.f32.mrb[0].mxu0
          %v899 = vadd.f32 0.0, %v898
          %v900 = vpop.f32.mrb[0].mxu0
          %v901 = vpop.f32.mrb[0].mxu0
          %v902 = vadd.f32 0.0, %v901
          %v903 = vpop.f32.mrb[0].mxu0
          %904 = vmatprep.mubr.bf16.mxu0 0
          %905 = vmatmul.mubr.bf16.gmra.mrb[0].mxu0 %v776
          %v906 = vpop.f32.mrb[0].mxu0
          %v907 = vadd.f32 0.0, %v906
          %v908 = vpop.f32.mrb[0].mxu0
          %v909 = vpop.f32.mrb[0].mxu0
          %v910 = vadd.f32 0.0, %v909
          %v911 = vpop.f32.mrb[0].mxu0
          %912 = vmatprep.mubr.bf16.mxu0 0
          %913 = vmatmul.mubr.bf16.gmra.mrb[0].mxu0 %v779
          %v914 = vpop.f32.mrb[0].mxu0
          %v915 = vadd.f32 0.0, %v914
          %v916 = vpop.f32.mrb[0].mxu0
          %v917 = vpop.f32.mrb[0].mxu0
          %v918 = vadd.f32 0.0, %v917
          %v919 = vpop.f32.mrb[0].mxu0
          %920 = vmatprep.mubr.bf16.mxu0 0
          %921 = vmatmul.mubr.bf16.gmra.mrb[0].mxu0 %v782
          %v922 = vpop.f32.mrb[0].mxu0
          %v923 = vadd.f32 0.0, %v922
          %v924 = vpop.f32.mrb[0].mxu0
          %v925 = vpop.f32.mrb[0].mxu0
          %v926 = vadd.f32 0.0, %v925
          %v927 = vpop.f32.mrb[0].mxu0
          %928 = vmatprep.mubr.bf16.mxu0 0
          %929 = vmatmul.mubr.bf16.gmra.mrb[0].mxu0 %v785
          %v930 = vpop.f32.mrb[0].mxu0
          %v931 = vadd.f32 0.0, %v930
          %v932 = vpop.f32.mrb[0].mxu0
          %v933 = vpop.f32.mrb[0].mxu0
          %v934 = vadd.f32 0.0, %v933
          %v935 = vpop.f32.mrb[0].mxu0
          %936 = vmatprep.mubr.bf16.mxu0 0
          %937 = vmatmul.mubr.bf16.gmra.mrb[0].mxu0 %v788
          %v938 = vpop.f32.mrb[0].mxu0
          %v939 = vadd.f32 0.0, %v938
          %v940 = vpop.f32.mrb[0].mxu0
          %v941 = vpop.f32.mrb[0].mxu0
          %v942 = vadd.f32 0.0, %v941
          %v943 = vpop.f32.mrb[0].mxu0
          %944 = vmatprep.mubr.bf16.mxu0 0
          %945 = vmatmul.mubr.bf16.gmra.mrb[0].mxu0 %v791
          %v946 = vpop.f32.mrb[0].mxu0
          %v947 = vadd.f32 0.0, %v946
          %v948 = vpop.f32.mrb[0].mxu0
          %v949 = vpop.f32.mrb[0].mxu0
          %v950 = vadd.f32 0.0, %v949
          %v951 = vpop.f32.mrb[0].mxu0
          %952 = vmatprep.mubr.bf16.mxu0 0
          %953 = vmatmul.mubr.bf16.gmra.mrb[0].mxu0 %v794
          %v954 = vpop.f32.mrb[0].mxu0
          %v955 = vadd.f32 0.0, %v954
          %v956 = vpop.f32.mrb[0].mxu0
          %v957 = vpop.f32.mrb[0].mxu0
          %v958 = vadd.f32 0.0, %v957
          %v959 = vpop.f32.mrb[0].mxu0
          %960 = vdwg.mxu0
          %v961 = vpack.c.bf16 %v838, %v835
          %v962 = vpack.c.bf16 %v846, %v843
          %v963 = vpack.c.bf16 %v854, %v851
          %v964 = vpack.c.bf16 %v862, %v859
          %v965 = vpack.c.bf16 %v870, %v867
          %v966 = vpack.c.bf16 %v878, %v875
          %v967 = vpack.c.bf16 %v886, %v883
          %v968 = vpack.c.bf16 %v894, %v891
          %v969 = vpack.c.bf16 %v902, %v899
          %v970 = vpack.c.bf16 %v910, %v907
          %v971 = vpack.c.bf16 %v918, %v915
          %v972 = vpack.c.bf16 %v926, %v923
          %v973 = vpack.c.bf16 %v934, %v931
          %v974 = vpack.c.bf16 %v942, %v939
          %v975 = vpack.c.bf16 %v950, %v947
          %v976 = vpack.c.bf16 %v958, %v955
          %v977 = vld [vmem:[%s590] sm:$0xf]
          %v978 = vld [vmem:[%s590 + $0x4] sm:$0xf]
          %v979 = vld [vmem:[%s590 + $0x8] sm:$0xf]
          %v980 = vld [vmem:[%s590 + $0xc] sm:$0xf]
          %v981 = vld [vmem:[%s590 + $0x10] sm:$0xf]
          %v982 = vld [vmem:[%s590 + $0x14] sm:$0xf]
          %v983 = vld [vmem:[%s590 + $0x18] sm:$0xf]
          %v984 = vld [vmem:[%s590 + $0x1c] sm:$0xf]
          %v985 = vld [vmem:[%s590 + $0x20] sm:$0xf]
          %v986 = vld [vmem:[%s590 + $0x24] sm:$0xf]
          %v987 = vld [vmem:[%s590 + $0x28] sm:$0xf]
          %v988 = vld [vmem:[%s590 + $0x2c] sm:$0xf]
          %v989 = vld [vmem:[%s590 + $0x30] sm:$0xf]
          %v990 = vld [vmem:[%s590 + $0x34] sm:$0xf]
          %v991 = vld [vmem:[%s590 + $0x38] sm:$0xf]
          %v992 = vld [vmem:[%s590 + $0x3c] sm:$0xf]
          %v993 = vld [vmem:[%s590 + $0x40] sm:$0xf]
          %v994 = vld [vmem:[%s590 + $0x44] sm:$0xf]
          %v995 = vld [vmem:[%s590 + $0x48] sm:$0xf]
          %v996 = vld [vmem:[%s590 + $0x4c] sm:$0xf]
          %v997 = vld [vmem:[%s590 + $0x50] sm:$0xf]
          %v998 = vld [vmem:[%s590 + $0x54] sm:$0xf]
          %v999 = vld [vmem:[%s590 + $0x58] sm:$0xf]
          %v1000 = vld [vmem:[%s590 + $0x5c] sm:$0xf]
          %v1001 = vld [vmem:[%s590 + $0x60] sm:$0xf]
          %v1002 = vld [vmem:[%s590 + $0x64] sm:$0xf]
          %v1003 = vld [vmem:[%s590 + $0x68] sm:$0xf]
          %v1004 = vld [vmem:[%s590 + $0x6c] sm:$0xf]
          %v1005 = vld [vmem:[%s590 + $0x70] sm:$0xf]
          %v1006 = vld [vmem:[%s590 + $0x74] sm:$0xf]
          %v1007 = vld [vmem:[%s590 + $0x78] sm:$0xf]
          %v1008 = vld [vmem:[%s590 + $0x7c] sm:$0xf]
          %v1041 = vunpack.c.l.b16 %v977
          %v1042 = vunpack.c.l.b16 %v978
          %v1043 = vunpack.c.l.b16 %v979
          %v1044 = vunpack.c.l.b16 %v980
          %v1045 = vunpack.c.l.b16 %v981
          %v1046 = vunpack.c.l.b16 %v982
          %v1047 = vunpack.c.l.b16 %v983
          %v1048 = vunpack.c.l.b16 %v984
          %v1049 = vunpack.c.l.b16 %v985
          %v1050 = vunpack.c.l.b16 %v986
          %v1051 = vunpack.c.l.b16 %v987
          %v1052 = vunpack.c.l.b16 %v988
          %v1053 = vunpack.c.l.b16 %v989
          %v1054 = vunpack.c.l.b16 %v990
          %v1055 = vunpack.c.l.b16 %v991
          %v1056 = vunpack.c.l.b16 %v992
          %v1057 = vunpack.c.l.b16 %v993
          %v1058 = vunpack.c.l.b16 %v994
          %v1059 = vunpack.c.l.b16 %v995
          %v1060 = vunpack.c.l.b16 %v996
          %v1061 = vunpack.c.l.b16 %v997
          %v1062 = vunpack.c.l.b16 %v998
          %v1063 = vunpack.c.l.b16 %v999
          %v1064 = vunpack.c.l.b16 %v1000
          %v1065 = vunpack.c.l.b16 %v1001
          %v1066 = vunpack.c.l.b16 %v1002
          %v1067 = vunpack.c.l.b16 %v1003
          %v1068 = vunpack.c.l.b16 %v1004
          %v1069 = vunpack.c.l.b16 %v1005
          %v1070 = vunpack.c.l.b16 %v1006
          %v1071 = vunpack.c.l.b16 %v1007
          %v1072 = vunpack.c.l.b16 %v1008
          %v1073 = vpack.c.b16 %v1042, %v1041
          %v1074 = vpack.c.b16 %v1044, %v1043
          %v1075 = vpack.c.b16 %v1046, %v1045
          %v1076 = vpack.c.b16 %v1048, %v1047
          %v1077 = vpack.c.b16 %v1050, %v1049
          %v1078 = vpack.c.b16 %v1052, %v1051
          %v1079 = vpack.c.b16 %v1054, %v1053
          %v1080 = vpack.c.b16 %v1056, %v1055
          %v1081 = vpack.c.b16 %v1058, %v1057
          %v1082 = vpack.c.b16 %v1060, %v1059
          %v1083 = vpack.c.b16 %v1062, %v1061
          %v1084 = vpack.c.b16 %v1064, %v1063
          %v1085 = vpack.c.b16 %v1066, %v1065
          %v1086 = vpack.c.b16 %v1068, %v1067
          %v1087 = vpack.c.b16 %v1070, %v1069
          %v1088 = vpack.c.b16 %v1072, %v1071
          %v1105 = vmul.bf16 %v961, %v1073
          %v1106 = vmul.bf16 %v962, %v1074
          %v1107 = vmul.bf16 %v963, %v1075
          %v1108 = vmul.bf16 %v964, %v1076
          %v1109 = vmul.bf16 %v965, %v1077
          %v1110 = vmul.bf16 %v966, %v1078
          %v1111 = vmul.bf16 %v967, %v1079
          %v1112 = vmul.bf16 %v968, %v1080
          %v1113 = vmul.bf16 %v969, %v1081
          %v1114 = vmul.bf16 %v970, %v1082
          %v1115 = vmul.bf16 %v971, %v1083
          %v1116 = vmul.bf16 %v972, %v1084
          %v1117 = vmul.bf16 %v973, %v1085
          %v1118 = vmul.bf16 %v974, %v1086
          %v1119 = vmul.bf16 %v975, %v1087
          %v1120 = vmul.bf16 %v976, %v1088
          %v1121 = vlaneseq
          %v1122 = vshrl.u32 %v1121, 7
          %s1123 = smul.u32 %s43, 8
          %v1124 = vstv %s1123
          %v1125 = vadd.s32 %v1122, %v1124
          %v1126 = vld [vmem:[%s568] sm:$0x3]
          %v1127 = vlaneseq
          %v1128 = vshrl.u32 %v1127, 7
          %v1129 = vsub.s32 0, %v1128
          %v1130 = vrot.slane %v1126, %v1129
          %v1131 = vlaneseq
          %v1132 = vshrl.u32 %v1131, 7
          %v1133 = vsub.s32 1, %v1132
          %v1134 = vrot.slane %v1126, %v1133
          %vm1135 = vcmp.eq.s32.totalorder %v1125, %v1130
          %vm1136 = vcmp.eq.s32.totalorder %v1125, %v1134
          %v1137 = vsel %vm1135, 1, 0
          %v1138 = vsel %vm1136, 1, 0
          %v1139 = vcvt.s32.f32 %v1137
          %v1140 = vcvt.s32.f32 %v1138
          %v1141 = vpack.c.bf16 %v1139, %v1139
          %v1142 = vpack.c.bf16 %v1140, %v1140
          %v1143 = vld [vmem:[#allocation2] sm:$0xff]
          %1144 = vmatprep.subr.bf16.mxu0 0
          %1145 = vmatpush1.bf16.msra.mxu0 %v1105
          %1146 = vmatprep.subr.bf16.mxu0 0
          %1147 = vmatpush1.bf16.msra.mxu0 %v1106
          %1148 = vmatprep.subr.bf16.mxu0 0
          %1149 = vmatpush1.bf16.msra.mxu0 %v1107
          %1150 = vmatprep.subr.bf16.mxu0 0
          %1151 = vmatpush1.bf16.msra.mxu0 %v1108
          %1152 = vmatprep.subr.bf16.mxu0 0
          %1153 = vmatpush1.bf16.msra.mxu0 %v1109
          %1154 = vmatprep.subr.bf16.mxu0 0
          %1155 = vmatpush1.bf16.msra.mxu0 %v1110
          %1156 = vmatprep.subr.bf16.mxu0 0
          %1157 = vmatpush1.bf16.msra.mxu0 %v1111
          %1158 = vmatprep.subr.bf16.mxu0 0
          %1159 = vmatpush1.bf16.msra.mxu0 %v1112
          %1160 = vmatprep.subr.bf16.mxu0 0
          %1161 = vmatpush1.bf16.msra.mxu0 %v1113
          %1162 = vmatprep.subr.bf16.mxu0 0
          %1163 = vmatpush1.bf16.msra.mxu0 %v1114
          %1164 = vmatprep.subr.bf16.mxu0 0
          %1165 = vmatpush1.bf16.msra.mxu0 %v1115
          %1166 = vmatprep.subr.bf16.mxu0 0
          %1167 = vmatpush1.bf16.msra.mxu0 %v1116
          %1168 = vmatprep.subr.bf16.mxu0 0
          %1169 = vmatpush1.bf16.msra.mxu0 %v1117
          %1170 = vmatprep.subr.bf16.mxu0 0
          %1171 = vmatpush1.bf16.msra.mxu0 %v1118
          %1172 = vmatprep.subr.bf16.mxu0 0
          %1173 = vmatpush1.bf16.msra.mxu0 %v1119
          %1174 = vmatprep.subr.bf16.mxu0 0
          %1175 = vmatpush1.bf16.msra.mxu0 %v1120
          %1176 = vmatprep.mubr.bf16.mxu0 %v1142
          %1177 = vmatmul.mubr.bf16.gmra.mrb[0].mxu0 %v1141
          %v1178 = vpop.f32.mrb[0].mxu0
          %v1179 = vadd.f32 0.0, %v1178
          %v1180 = vpop.f32.mrb[0].mxu0
          %v1181 = vpop.f32.mrb[0].mxu0
          %v1182 = vpop.f32.mrb[0].mxu0
          %1183 = vdwg.mxu0
          %v1184 = vadd.f32 %v1143, %v1179
          %vm1185 = vcmask 261120
          %1186 = vst.msk [vmem:[#allocation2] sm:$0xff] %vm1185, %v1184
        $region72: #{tpu_custom_call.1} parent=63 // pred_fallthru
          _
        // Predicated region
        $region73: #{tpu_custom_call.1} parent=63 // pred_check
          %p1187 = pneg %p623
        $region74: #{tpu_custom_call.1} parent=63 // pred_check_branch
          %1189 = sbr.rel (%p1187) target = $region76
        $region75: #{tpu_custom_call.1} parent=63 // pred_region
          %v1190 = vld [vmem:[#allocation2] sm:$0xff]
          %v1191 = vld [vmem:[%s8] sm:$0xff]
          %v1192 = vld [vmem:[%s8 + $0x8] sm:$0xff]
          %v1193 = vld [vmem:[%s8 + $0x10] sm:$0xff]
          %v1194 = vld [vmem:[%s8 + $0x18] sm:$0xff]
          %v1195 = vld [vmem:[#allocation6] sm:$0x1]
          %v1197 = vlaneseq
          %v1198 = vshrl.u32 %v1197, 7
          %v1199 = vsub.s32 0, %v1198
          %v1200 = vrot.slane %v1195, %v1199
          %vm1202 = vcmask 261120
          %v1204 = vsel %vm1202, %v1190, 0
          %1206 = vmatprep.subr.mxu0 0.0
          %1207 = vmatpush1.msra.mxu0 %v1191
          %1208 = vmatprep.subr.mxu0 0.0
          %1209 = vmatpush1.msra.mxu0 %v1192
          %1210 = vmatprep.subr.mxu0 0.0
          %1211 = vmatpush1.msra.mxu0 %v1193
          %1212 = vmatprep.subr.mxu0 0.0
          %1213 = vmatpush1.msra.mxu0 %v1194
          %1214 = vmatprep.subr.mxu0 0.0
          %1215 = vmatpush1.msra.mxu0 0.0
          %1216 = vmatprep.subr.mxu0 0.0
          %1217 = vmatpush1.msra.mxu0 0.0
          %1218 = vmatprep.subr.mxu0 0.0
          %1219 = vmatpush1.msra.mxu0 0.0
          %1220 = vmatprep.subr.mxu0 0.0
          %1221 = vmatpush1.msra.mxu0 0.0
          %1222 = vmatprep.subr.mxu0 0.0
          %1223 = vmatpush1.msra.mxu0 0.0
          %1224 = vmatprep.subr.mxu0 0.0
          %1225 = vmatpush1.msra.mxu0 0.0
          %1226 = vmatprep.subr.mxu0 0.0
          %1227 = vmatpush1.msra.mxu0 0.0
          %1228 = vmatprep.subr.mxu0 0.0
          %1229 = vmatpush1.msra.mxu0 0.0
          %1230 = vmatprep.subr.mxu0 0.0
          %1231 = vmatpush1.msra.mxu0 0.0
          %1232 = vmatprep.subr.mxu0 0.0
          %1233 = vmatpush1.msra.mxu0 0.0
          %1234 = vmatprep.subr.mxu0 0.0
          %1235 = vmatpush1.msra.mxu0 0.0
          %1236 = vmatprep.subr.mxu0 0.0
          %1237 = vmatpush1.msra.mxu0 0.0
          %1238 = vmatprep.subr.mxu0 0.0
          %1239 = vmatpush1.msra.mxu0 0.0
          %1240 = vmatprep.subr.mxu0 0.0
          %1241 = vmatpush1.msra.mxu0 0.0
          %1242 = vmatprep.subr.mxu0 0.0
          %1243 = vmatpush1.msra.mxu0 0.0
          %1244 = vmatprep.subr.mxu0 0.0
          %1245 = vmatpush1.msra.mxu0 0.0
          %1246 = vmatprep.subr.mxu0 0.0
          %1247 = vmatpush1.msra.mxu0 0.0
          %1248 = vmatprep.subr.mxu0 0.0
          %1249 = vmatpush1.msra.mxu0 0.0
          %1250 = vmatprep.subr.mxu0 0.0
          %1251 = vmatpush1.msra.mxu0 0.0
          %1252 = vmatprep.subr.mxu0 0.0
          %1253 = vmatpush1.msra.mxu0 0.0
          %1254 = vmatprep.subr.mxu0 0.0
          %1255 = vmatpush1.msra.mxu0 0.0
          %1256 = vmatprep.subr.mxu0 0.0
          %1257 = vmatpush1.msra.mxu0 0.0
          %1258 = vmatprep.subr.mxu0 0.0
          %1259 = vmatpush1.msra.mxu0 0.0
          %1260 = vmatprep.subr.mxu0 0.0
          %1261 = vmatpush1.msra.mxu0 0.0
          %1262 = vmatprep.subr.mxu0 0.0
          %1263 = vmatpush1.msra.mxu0 0.0
          %1264 = vmatprep.subr.mxu0 0.0
          %1265 = vmatpush1.msra.mxu0 0.0
          %1266 = vmatprep.subr.mxu0 0.0
          %1267 = vmatpush1.msra.mxu0 0.0
          %1268 = vmatprep.subr.mxu0 0.0
          %1269 = vmatpush1.msra.mxu0 0.0
          %1270 = vmatprep.mubr.f32.mxu0 0.0
          %1271 = vmatmul.mubr.f32.gmra.mrb[0].mxu0 %v1204
          %v1272 = vpop.f32.mrb[0].mxu0
          %v1273 = vadd.f32 %v1200, %v1272
          %v1274 = vpop.f32.mrb[0].mxu0
          %1275 = vdwg.mxu0
          %v1276 = vld [vmem:[%s6] sm:$0xff]
          %v1277 = vld [vmem:[%s6 + $0x8] sm:$0xff]
          %v1278 = vld [vmem:[%s6 + $0x10] sm:$0xff]
          %v1279 = vld [vmem:[%s6 + $0x18] sm:$0xff]
          %v1280 = vld [vmem:[%s7] sm:$0x1]
          %v1282 = vlaneseq
          %v1283 = vshrl.u32 %v1282, 7
          %v1284 = vsub.s32 0, %v1283
          %v1285 = vrot.slane %v1280, %v1284
          %1287 = vmatprep.subr.mxu0 0.0
          %1288 = vmatpush1.msra.mxu0 %v1276
          %1289 = vmatprep.subr.mxu0 0.0
          %1290 = vmatpush1.msra.mxu0 %v1277
          %1291 = vmatprep.subr.mxu0 0.0
          %1292 = vmatpush1.msra.mxu0 %v1278
          %1293 = vmatprep.subr.mxu0 0.0
          %1294 = vmatpush1.msra.mxu0 %v1279
          %1295 = vmatprep.subr.mxu0 0.0
          %1296 = vmatpush1.msra.mxu0 0.0
          %1297 = vmatprep.subr.mxu0 0.0
          %1298 = vmatpush1.msra.mxu0 0.0
          %1299 = vmatprep.subr.mxu0 0.0
          %1300 = vmatpush1.msra.mxu0 0.0
          %1301 = vmatprep.subr.mxu0 0.0
          %1302 = vmatpush1.msra.mxu0 0.0
          %1303 = vmatprep.subr.mxu0 0.0
          %1304 = vmatpush1.msra.mxu0 0.0
          %1305 = vmatprep.subr.mxu0 0.0
          %1306 = vmatpush1.msra.mxu0 0.0
          %1307 = vmatprep.subr.mxu0 0.0
          %1308 = vmatpush1.msra.mxu0 0.0
          %1309 = vmatprep.subr.mxu0 0.0
          %1310 = vmatpush1.msra.mxu0 0.0
          %1311 = vmatprep.subr.mxu0 0.0
          %1312 = vmatpush1.msra.mxu0 0.0
          %1313 = vmatprep.subr.mxu0 0.0
          %1314 = vmatpush1.msra.mxu0 0.0
          %1315 = vmatprep.subr.mxu0 0.0
          %1316 = vmatpush1.msra.mxu0 0.0
          %1317 = vmatprep.subr.mxu0 0.0
          %1318 = vmatpush1.msra.mxu0 0.0
          %1319 = vmatprep.subr.mxu0 0.0
          %1320 = vmatpush1.msra.mxu0 0.0
          %1321 = vmatprep.subr.mxu0 0.0
          %1322 = vmatpush1.msra.mxu0 0.0
          %1323 = vmatprep.subr.mxu0 0.0
          %1324 = vmatpush1.msra.mxu0 0.0
          %1325 = vmatprep.subr.mxu0 0.0
          %1326 = vmatpush1.msra.mxu0 0.0
          %1327 = vmatprep.subr.mxu0 0.0
          %1328 = vmatpush1.msra.mxu0 0.0
          %1329 = vmatprep.subr.mxu0 0.0
          %1330 = vmatpush1.msra.mxu0 0.0
          %1331 = vmatprep.subr.mxu0 0.0
          %1332 = vmatpush1.msra.mxu0 0.0
          %1333 = vmatprep.subr.mxu0 0.0
          %1334 = vmatpush1.msra.mxu0 0.0
          %1335 = vmatprep.subr.mxu0 0.0
          %1336 = vmatpush1.msra.mxu0 0.0
          %1337 = vmatprep.subr.mxu0 0.0
          %1338 = vmatpush1.msra.mxu0 0.0
          %1339 = vmatprep.subr.mxu0 0.0
          %1340 = vmatpush1.msra.mxu0 0.0
          %1341 = vmatprep.subr.mxu0 0.0
          %1342 = vmatpush1.msra.mxu0 0.0
          %1343 = vmatprep.subr.mxu0 0.0
          %1344 = vmatpush1.msra.mxu0 0.0
          %1345 = vmatprep.subr.mxu0 0.0
          %1346 = vmatpush1.msra.mxu0 0.0
          %1347 = vmatprep.subr.mxu0 0.0
          %1348 = vmatpush1.msra.mxu0 0.0
          %1349 = vmatprep.subr.mxu0 0.0
          %1350 = vmatpush1.msra.mxu0 0.0
          %1351 = vmatprep.mubr.f32.mxu0 0.0
          %1352 = vmatmul.mubr.f32.gmra.mrb[0].mxu0 %v1204
          %v1353 = vpop.f32.mrb[0].mxu0
          %v1354 = vadd.f32 %v1285, %v1353
          %v1355 = vpop.f32.mrb[0].mxu0
          %1356 = vdwg.mxu0
          %v1357 = vpack.c.bf16 %v1354, %v1354
          %v1358 = vld [vmem:[%s10] sm:$0xf]
          %v1359 = vld [vmem:[%s10 + $0x4] sm:$0xf]
          %v1360 = vld [vmem:[%s10 + $0x8] sm:$0xf]
          %v1361 = vld [vmem:[%s10 + $0xc] sm:$0xf]
          %v1362 = vld [vmem:[%s11] sm:$0x1]
          %v1364 = vlaneseq
          %v1365 = vshrl.u32 %v1364, 7
          %v1366 = vsub.s32 0, %v1365
          %v1367 = vrot.slane %v1362, %v1366
          %v1373 = vunpack.c.l.b16 %v1358
          %v1374 = vunpack.c.l.b16 %v1359
          %v1375 = vunpack.c.l.b16 %v1360
          %v1376 = vunpack.c.l.b16 %v1361
          %v1377 = vpack.c.b16 %v1374, %v1373
          %v1378 = vpack.c.b16 %v1376, %v1375
          %v1382 = vsel %vm1202, %v1357, 0
          %1384 = vmatprep.subr.bf16.mxu0 0
          %1385 = vmatpush1.bf16.msra.mxu0 %v1377
          %1386 = vmatprep.subr.bf16.mxu0 0
          %1387 = vmatpush1.bf16.msra.mxu0 %v1378
          %1388 = vmatprep.subr.bf16.mxu0 0
          %1389 = vmatpush1.bf16.msra.mxu0 0
          %1390 = vmatprep.subr.bf16.mxu0 0
          %1391 = vmatpush1.bf16.msra.mxu0 0
          %1392 = vmatprep.subr.bf16.mxu0 0
          %1393 = vmatpush1.bf16.msra.mxu0 0
          %1394 = vmatprep.subr.bf16.mxu0 0
          %1395 = vmatpush1.bf16.msra.mxu0 0
          %1396 = vmatprep.subr.bf16.mxu0 0
          %1397 = vmatpush1.bf16.msra.mxu0 0
          %1398 = vmatprep.subr.bf16.mxu0 0
          %1399 = vmatpush1.bf16.msra.mxu0 0
          %1400 = vmatprep.subr.bf16.mxu0 0
          %1401 = vmatpush1.bf16.msra.mxu0 0
          %1402 = vmatprep.subr.bf16.mxu0 0
          %1403 = vmatpush1.bf16.msra.mxu0 0
          %1404 = vmatprep.subr.bf16.mxu0 0
          %1405 = vmatpush1.bf16.msra.mxu0 0
          %1406 = vmatprep.subr.bf16.mxu0 0
          %1407 = vmatpush1.bf16.msra.mxu0 0
          %1408 = vmatprep.subr.bf16.mxu0 0
          %1409 = vmatpush1.bf16.msra.mxu0 0
          %1410 = vmatprep.subr.bf16.mxu0 0
          %1411 = vmatpush1.bf16.msra.mxu0 0
          %1412 = vmatprep.subr.bf16.mxu0 0
          %1413 = vmatpush1.bf16.msra.mxu0 0
          %1414 = vmatprep.subr.bf16.mxu0 0
          %1415 = vmatpush1.bf16.msra.mxu0 0
          %1416 = vmatprep.mubr.bf16.mxu0 0
          %1417 = vmatmul.mubr.bf16.gmra.mrb[0].mxu0 %v1382
          %v1418 = vpop.f32.mrb[0].mxu0
          %v1419 = vadd.f32 %v1367, %v1418
          %v1420 = vpop.f32.mrb[0].mxu0
          %v1421 = vpop.f32.mrb[0].mxu0
          %v1422 = vpop.f32.mrb[0].mxu0
          %1423 = vdwg.mxu0
          %v1424 = vxor.u32 %v1419, 2147483648
          %v1425 = vmul.f32 %v1424, 1.442695
          %v1426 = vpow.pop %v1425
          %v1427 = vadd.f32 %v1426, 1.0
          %v1428 = vrcp.pop %v1427
          %v1429 = vmul.f32 1.0, %v1428
          %v1430 = vmul.f32 %v1419, %v1429
          %v1431 = vpack.c.bf16 %v1430, %v1430
          %s1432 = scalar_lea.vmem %s10, 16
          %v1433 = vld [vmem:[%s1432] sm:$0xf]
          %v1434 = vld [vmem:[%s1432 + $0x4] sm:$0xf]
          %v1435 = vld [vmem:[%s1432 + $0x8] sm:$0xf]
          %v1436 = vld [vmem:[%s1432 + $0xc] sm:$0xf]
          %s1437 = scalar_lea.vmem %s11, 1
          %v1438 = vld [vmem:[%s1437] sm:$0x1]
          %v1440 = vlaneseq
          %v1441 = vshrl.u32 %v1440, 7
          %v1442 = vsub.s32 0, %v1441
          %v1443 = vrot.slane %v1438, %v1442
          %v1449 = vunpack.c.l.b16 %v1433
          %v1450 = vunpack.c.l.b16 %v1434
          %v1451 = vunpack.c.l.b16 %v1435
          %v1452 = vunpack.c.l.b16 %v1436
          %v1453 = vpack.c.b16 %v1450, %v1449
          %v1454 = vpack.c.b16 %v1452, %v1451
          %v1458 = vsel %vm1202, %v1431, 0
          %1460 = vmatprep.subr.bf16.mxu0 0
          %1461 = vmatpush1.bf16.msra.mxu0 %v1453
          %1462 = vmatprep.subr.bf16.mxu0 0
          %1463 = vmatpush1.bf16.msra.mxu0 %v1454
          %1464 = vmatprep.subr.bf16.mxu0 0
          %1465 = vmatpush1.bf16.msra.mxu0 0
          %1466 = vmatprep.subr.bf16.mxu0 0
          %1467 = vmatpush1.bf16.msra.mxu0 0
          %1468 = vmatprep.subr.bf16.mxu0 0
          %1469 = vmatpush1.bf16.msra.mxu0 0
          %1470 = vmatprep.subr.bf16.mxu0 0
          %1471 = vmatpush1.bf16.msra.mxu0 0
          %1472 = vmatprep.subr.bf16.mxu0 0
          %1473 = vmatpush1.bf16.msra.mxu0 0
          %1474 = vmatprep.subr.bf16.mxu0 0
          %1475 = vmatpush1.bf16.msra.mxu0 0
          %1476 = vmatprep.subr.bf16.mxu0 0
          %1477 = vmatpush1.bf16.msra.mxu0 0
          %1478 = vmatprep.subr.bf16.mxu0 0
          %1479 = vmatpush1.bf16.msra.mxu0 0
          %1480 = vmatprep.subr.bf16.mxu0 0
          %1481 = vmatpush1.bf16.msra.mxu0 0
          %1482 = vmatprep.subr.bf16.mxu0 0
          %1483 = vmatpush1.bf16.msra.mxu0 0
          %1484 = vmatprep.subr.bf16.mxu0 0
          %1485 = vmatpush1.bf16.msra.mxu0 0
          %1486 = vmatprep.subr.bf16.mxu0 0
          %1487 = vmatpush1.bf16.msra.mxu0 0
          %1488 = vmatprep.subr.bf16.mxu0 0
          %1489 = vmatpush1.bf16.msra.mxu0 0
          %1490 = vmatprep.subr.bf16.mxu0 0
          %1491 = vmatpush1.bf16.msra.mxu0 0
          %1492 = vmatprep.mubr.bf16.mxu0 0
          %1493 = vmatmul.mubr.bf16.gmra.mrb[0].mxu0 %v1458
          %v1494 = vpop.f32.mrb[0].mxu0
          %v1495 = vadd.f32 %v1443, %v1494
          %v1496 = vpop.f32.mrb[0].mxu0
          %v1497 = vpop.f32.mrb[0].mxu0
          %v1498 = vpop.f32.mrb[0].mxu0
          %1499 = vdwg.mxu0
          %v1500 = vxor.u32 %v1495, 2147483648
          %v1501 = vmul.f32 %v1500, 1.442695
          %v1502 = vpow.pop %v1501
          %v1503 = vadd.f32 %v1502, 1.0
          %v1504 = vrcp.pop %v1503
          %v1505 = vmul.f32 1.0, %v1504
          %v1506 = vmul.f32 %v1495, %v1505
          %v1507 = vpack.c.bf16 %v1506, %v1506
          %v1508 = vld [vmem:[%s12] sm:$0xf]
          %v1509 = vld [vmem:[%s12 + $0x4] sm:$0xf]
          %v1510 = vld [vmem:[%s12 + $0x8] sm:$0xf]
          %v1511 = vld [vmem:[%s12 + $0xc] sm:$0xf]
          %v1516 = vunpack.c.l.b16 %v1508
          %v1517 = vunpack.c.l.b16 %v1509
          %v1518 = vunpack.c.l.b16 %v1510
          %v1519 = vunpack.c.l.b16 %v1511
          %v1520 = vpack.c.b16 %v1517, %v1516
          %v1521 = vpack.c.b16 %v1519, %v1518
          %v1525 = vsel %vm1202, %v1507, 0
          %1527 = vmatprep.subr.bf16.mxu0 0
          %1528 = vmatpush1.bf16.msra.mxu0 %v1520
          %1529 = vmatprep.subr.bf16.mxu0 0
          %1530 = vmatpush1.bf16.msra.mxu0 %v1521
          %1531 = vmatprep.subr.bf16.mxu0 0
          %1532 = vmatpush1.bf16.msra.mxu0 0
          %1533 = vmatprep.subr.bf16.mxu0 0
          %1534 = vmatpush1.bf16.msra.mxu0 0
          %1535 = vmatprep.subr.bf16.mxu0 0
          %1536 = vmatpush1.bf16.msra.mxu0 0
          %1537 = vmatprep.subr.bf16.mxu0 0
          %1538 = vmatpush1.bf16.msra.mxu0 0
          %1539 = vmatprep.subr.bf16.mxu0 0
          %1540 = vmatpush1.bf16.msra.mxu0 0
          %1541 = vmatprep.subr.bf16.mxu0 0
          %1542 = vmatpush1.bf16.msra.mxu0 0
          %1543 = vmatprep.subr.bf16.mxu0 0
          %1544 = vmatpush1.bf16.msra.mxu0 0
          %1545 = vmatprep.subr.bf16.mxu0 0
          %1546 = vmatpush1.bf16.msra.mxu0 0
          %1547 = vmatprep.subr.bf16.mxu0 0
          %1548 = vmatpush1.bf16.msra.mxu0 0
          %1549 = vmatprep.subr.bf16.mxu0 0
          %1550 = vmatpush1.bf16.msra.mxu0 0
          %1551 = vmatprep.subr.bf16.mxu0 0
          %1552 = vmatpush1.bf16.msra.mxu0 0
          %1553 = vmatprep.subr.bf16.mxu0 0
          %1554 = vmatpush1.bf16.msra.mxu0 0
          %1555 = vmatprep.subr.bf16.mxu0 0
          %1556 = vmatpush1.bf16.msra.mxu0 0
          %1557 = vmatprep.subr.bf16.mxu0 0
          %1558 = vmatpush1.bf16.msra.mxu0 0
          %1559 = vmatprep.mubr.bf16.mxu0 0
          %1560 = vmatmul.mubr.bf16.gmra.mrb[0].mxu0 %v1525
          %v1561 = vpop.f32.mrb[0].mxu0
          %v1562 = vadd.f32 0.0, %v1561
          %v1563 = vpop.f32.mrb[0].mxu0
          %v1564 = vpop.f32.mrb[0].mxu0
          %v1565 = vpop.f32.mrb[0].mxu0
          %1566 = vdwg.mxu0
          %1568 = vset.pattern.permute.xlu0 0
          %1569 = vperm.xlu0 %1568, %v1273
          %v1570 = vpop.permute.xlu0 %1569
          %v1572 = vmul.f32 %v1562, %v1570
          %1573 = vst [vmem:[%s556] sm:$0xff] %v1572
        $region76: #{tpu_custom_call.1} parent=63 // pred_fallthru
          _
        %s1574 = sand.u32 %s353, 1
        %s1575 = scalar_lea.sflag [#allocation8], %s1574
        %s1576 = sand.u32 %s353, 1
        %s1577 = smul.addr %s1576, 8
        %s1578 = scalar_lea.vmem [#allocation7], %s1577
        // Predicated region
        $region77: #{tpu_custom_call.1} parent=63 // pred_check
          %p1579 = pneg %p363
        $region78: #{tpu_custom_call.1} parent=63 // pred_check_branch
          %1581 = sbr.rel (%p1579) target = $region80
        $region79: #{tpu_custom_call.1} parent=63 // pred_region
          %s1583 = ssub.s32 128, 128
          %1584 = vsyncadd %s1575, %s1583
          %s1585 = smul.addr %s43, 128
          %s1586 = scalar_lea.hbm %s13, %s1585
          %s1588 = sshll.u32 %s1578, 4
          %s1589 = int_to_ptr.vmem [resolvable:$true] %s1588
          %1591 = dma.vmem_to_hbm [thread:$0]  %s1589, 128, %s1586, %s1575
        $region80: #{tpu_custom_call.1} parent=63 // pred_fallthru
          _
      $region64: #{tpu_custom_call.1} parent=5 // pred_fallthru
        _
      %p1592 = scmp.le.s32.totalorder 2, %s34
      // Predicated region
      $region81: #{tpu_custom_call.1} parent=5 // pred_check
        %p1593 = pneg %p1592
      $region82: #{tpu_custom_call.1} parent=5 // pred_check_branch
        %1595 = sbr.rel (%p1593) target = $region84
      $region83: #{tpu_custom_call.1} parent=5 // pred_region
        %s1596 = ssub.s32 %s34, 2
        // Predicated region
        $region85: #{tpu_custom_call.1} parent=83 // pred_check
          %p1597 = pneg %p369
        $region86: #{tpu_custom_call.1} parent=83 // pred_check_branch
          %1599 = sbr.rel (%p1597) target = $region88
        $region87: #{tpu_custom_call.1} parent=83 // pred_region
          %s1600 = sand.u32 %s354, 1
          %s1601 = scalar_lea.sflag [#allocation8], %s1600
          %s1602 = sand.u32 %s354, 1
          %s1603 = smul.addr %s1602, 8
          %s1604 = scalar_lea.vmem [#allocation7], %s1603
          %1605 = dma.done %s1601, 128
        $region88: #{tpu_custom_call.1} parent=83 // pred_fallthru
          _
      $region84: #{tpu_custom_call.1} parent=5 // pred_fallthru
        _
    $region6: #{tpu_custom_call.1} parent=1 // loop_footer
      %s38 = sadd.s32 1, %s34
    $region7: #{tpu_custom_call.1} parent=1 // loop_footer_branch
      %33 = sbr.rel target = $region3
    $region8: #{tpu_custom_call.1} parent=1 // loop_exit
      _
    %1606 = vsyncpa [#allocation8], 1
    %s1607 = scalar_lea.sflag [#allocation8], 1
    %1608 = vsyncpa %s1607, 1

</llo_original>
